<compile_context>
chip_gen: v6e
topology: v6e:2x2x1
jax: 0.10.0
libtpu: 0.0.40
codegen_flags: <defaults>
</compile_context>

<pallas_src>
import functools

import numpy as np

import jax
import jax.numpy as jnp
from jax.experimental import pallas as pl
from jax.experimental.pallas import tpu as pltpu


def _softplus(x):
    # numerically stable softplus from exp/log/abs/max only
    return jnp.maximum(x, 0.0) + jnp.log(1.0 + jnp.exp(-jnp.abs(x)))


def _elu(x):
    # exp(x)-1 on the negative branch (expm1 avoided; diff << tolerance)
    return jnp.where(x > 0, x, jnp.exp(x) - 1.0)


def _pow_static(x, power):
    p = float(power)
    if p.is_integer() and 0.0 <= p <= 16.0:
        return x ** int(p)                        # lax.integer_pow, always lowers
    # general case; x >= 0 here (clamped), define 0**p := 0
    return jnp.where(x > 0, jnp.exp(p * jnp.log(jnp.maximum(x, 1e-30))), 0.0)


def _mvn_profile_kernel(rep_ref, sp_ref, w_ref, b_ref, basis_ref, out_ref,
                        coef_ref, *, base_sigma, power):
    # ---- fused tiny linear layers: [mean_layer || scale_layer], one MXU push ----
    lin = jnp.dot(rep_ref[...], w_ref[...],
                  preferred_element_type=jnp.float32) + b_ref[...]          # (bt, 9)
    mx, my, mz = lin[:, 0:1], lin[:, 1:2], lin[:, 2:3]                      # (bt, 1)
    scales = _elu(lin[:, 3:9]) + 1.0                                        # (bt, 6)

    # ---- signal-aware blending with the isotropic fallback (no const array) ----
    alpha = _pow_static(jnp.clip(sp_ref[...], 0.0, 1.0), power)             # (bt, 1)
    iso = (1.0 - alpha) * base_sigma                                        # diag-only

    # FillScaleTriL: row-major lower-triangular fill, softplus on the diagonal
    l00 = _softplus(alpha * scales[:, 0:1] + iso)
    l10 = alpha * scales[:, 1:2]
    l11 = _softplus(alpha * scales[:, 2:3] + iso)
    l20 = alpha * scales[:, 3:4]
    l21 = alpha * scales[:, 4:5]
    l22 = _softplus(alpha * scales[:, 5:6] + iso)

    # ---- A = L^-1 (lower triangular), M = A^T A — all narrow (bt,1) math ----
    a00 = 1.0 / l00
    a11 = 1.0 / l11
    a22 = 1.0 / l22
    a10 = -(l10 * a00) * a11
    a21 = -(l21 * a11) * a22
    a20 = (l10 * l21 - l20 * l11) * (a00 * a11 * a22)

    m00 = a00 * a00 + a10 * a10 + a20 * a20
    m01 = a10 * a11 + a20 * a21
    m02 = a20 * a22
    m11 = a11 * a11 + a21 * a21
    m12 = a21 * a22
    m22 = a22 * a22

    gx = m00 * mx + m01 * my + m02 * mz
    gy = m01 * mx + m11 * my + m12 * mz
    gz = m02 * mx + m12 * my + m22 * mz

    # Coefficients of 0.5*(p-mu)^T M (p-mu) as a polynomial over the basis rows
    # [x^2, y^2, z^2, xy, xz, yz, x, y, z, 1, penalty, 0, 0, 0, 0, 0].
    coef_ref[...] = jnp.zeros_like(coef_ref)
    coef_ref[:, 0:1] = 0.5 * m00
    coef_ref[:, 1:2] = 0.5 * m11
    coef_ref[:, 2:3] = 0.5 * m22
    coef_ref[:, 3:4] = m01
    coef_ref[:, 4:5] = m02
    coef_ref[:, 5:6] = m12
    coef_ref[:, 6:7] = -gx
    coef_ref[:, 7:8] = -gy
    coef_ref[:, 8:9] = -gz
    coef_ref[:, 9:10] = 0.5 * (mx * gx + my * gy + mz * gz)
    coef_ref[:, 10:11] = jnp.ones_like(mx)          # penalty coefficient (exact in bf16)

    # hi/lo split of the coefficients: basis entries are exact small integers in
    # bf16, so  dot(c_hi, P) + dot(c_lo, P)  is f32-accurate regardless of the
    # MXU's native f32 pass precision.
    coef = coef_ref[...]
    c_hi = coef.astype(jnp.bfloat16).astype(jnp.float32)
    c_lo = coef - c_hi
    basis = basis_ref[...]                                                   # (16, Npad)
    half_maha = (jnp.dot(c_hi, basis, preferred_element_type=jnp.float32)
                 + jnp.dot(c_lo, basis, preferred_element_type=jnp.float32))  # (bt, Npad)

    # exp-normalize: log-det and log(2*pi) constants cancel under the per-row
    # max subtraction, so only the quadratic term survives.  Padded pixel
    # columns carry +1e30 -> exp underflows to exactly 0.
    m = jnp.min(half_maha, axis=-1, keepdims=True)                           # (bt, 1)
    p = jnp.exp(m - half_maha)
    denom = jnp.sum(p, axis=-1, keepdims=True) + 1e-10                       # (bt, 1)
    out_ref[...] = p * (1.0 / denom)                 # exact narrow recip, broadcast mul


def _build_basis(image_shape):
    """Host-side constant: quadratic pixel basis (16, Npad), lane-padded to 128."""
    d, h, w = image_shape
    n = d * h * w
    n_pad = ((n + 127) // 128) * 128
    z_c = np.arange(d, dtype=np.float64) - (d - 1) / 2.0
    y_c = np.arange(h, dtype=np.float64) - (h - 1) / 2.0
    x_c = np.arange(w, dtype=np.float64) - (w - 1) / 2.0
    zz, yy, xx = np.meshgrid(z_c, y_c, x_c, indexing="ij")   # (d,h,w), row-major flatten
    x = np.zeros(n_pad); x[:n] = xx.reshape(-1)
    y = np.zeros(n_pad); y[:n] = yy.reshape(-1)
    z = np.zeros(n_pad); z[:n] = zz.reshape(-1)
    one = np.zeros(n_pad); one[:n] = 1.0
    pen = np.zeros(n_pad); pen[n:] = 1e30             # +1e30 penalty on padded pixels
    zero = np.zeros(n_pad)
    basis = np.stack([x * x, y * y, z * z, x * y, x * z, y * z,
                      x, y, z, one, pen, zero, zero, zero, zero, zero],
                     axis=0).astype(np.float32)        # (16, n_pad)
    return basis, n, n_pad


def temp_signal_aware_mvn_profile(representation, signal_prob, params,
                                  image_shape=(3, 21, 21),
                                  base_sigma=5.0, power=3.0):
    B, D = representation.shape
    basis, N, n_pad = _build_basis(image_shape)
    K = basis.shape[0]

    # Fuse the two tiny linears into one (D, 9) matmul (constant-folds under jit).
    w_cat = jnp.concatenate([params["wm"].astype(jnp.float32),
                             params["ws"].astype(jnp.float32)], axis=1)     # (D, 9)
    b_cat = jnp.concatenate([params["bm"].astype(jnp.float32),
                             params["bs"].astype(jnp.float32)], axis=1)     # (1, 9)

    # Batch tile: multiple of 8; at least 2 grid steps for moderate B so both
    # v7x TensorCores get work; capped at 512 so ~2 live (bt, 1408) f32 slabs +
    # the double-buffered output stay well inside the default scoped VMEM on
    # v5e / v6e / v7x.
    bt = min(512, max(8, (((B + 1) // 2 + 7) // 8) * 8))
    B_pad = ((B + bt - 1) // bt) * bt
    rep = jnp.pad(representation.astype(jnp.float32), ((0, B_pad - B), (0, 0)))
    sp = jnp.pad(signal_prob.reshape(B, 1).astype(jnp.float32),
                 ((0, B_pad - B), (0, 0)))

    kernel = functools.partial(_mvn_profile_kernel,
                               base_sigma=float(base_sigma), power=float(power))

    out = pl.pallas_call(
        kernel,
        out_shape=jax.ShapeDtypeStruct((B_pad, n_pad), jnp.float32),
        grid=(B_pad // bt,),
        in_specs=[
            pl.BlockSpec((bt, D), lambda i: (i, 0)),          # representation tile
            pl.BlockSpec((bt, 1), lambda i: (i, 0)),          # signal_prob tile
            pl.BlockSpec((D, 9), lambda i: (0, 0)),           # fused weights (resident)
            pl.BlockSpec((1, 9), lambda i: (0, 0)),           # fused bias (resident)
            pl.BlockSpec((K, n_pad), lambda i: (0, 0)),       # quadratic pixel basis
        ],
        out_specs=pl.BlockSpec((bt, n_pad), lambda i: (i, 0)),
        scratch_shapes=[pltpu.VMEM((bt, 16), jnp.float32)],   # per-batch coefficients
        compiler_params=pltpu.CompilerParams(
            dimension_semantics=("parallel",)),
    )(rep, sp, w_cat, b_cat, jnp.asarray(basis))

    # TODO(synk): the lane-padded (B_pad, 1408) slab (exact zeros on padded pixels)
    # could be returned as-is and masked downstream to avoid this non-lane-aligned
    # slice copy, which roughly doubles output HBM traffic.
    return out[:B, :N]                                                        # (B, d*h*w)


if __name__ == "__main__":
    B, D = 2, 32
    image_shape = (3, 21, 21)
    base_sigma, power = 5.0, 3.0

    key = jax.random.PRNGKey(0)
    k1, k2, k3, k4 = jax.random.split(key, 4)

    representation = jax.random.normal(k1, (B, D), dtype=jnp.float32)
    signal_prob = jax.random.uniform(k2, (B,), dtype=jnp.float32)

    params = {
        "wm": 0.1 * jax.random.normal(k3, (D, 3), dtype=jnp.float32),  # mean_layer weight^T
        "bm": jnp.zeros((1, 3), dtype=jnp.float32),                    # mean_layer bias
        "ws": 0.1 * jax.random.normal(k4, (D, 6), dtype=jnp.float32),  # scale_layer weight^T
        "bs": jnp.zeros((1, 6), dtype=jnp.float32),                    # scale_layer bias
    }

    profiles = temp_signal_aware_mvn_profile(representation, signal_prob, params,
                                             image_shape=image_shape,
                                             base_sigma=base_sigma, power=power)
    jax.block_until_ready(profiles)

    # ---- pure-JAX reference (same math as the torch module) ----
    def reference(rep, sp):
        hi = jax.lax.Precision.HIGHEST
        means = jnp.dot(rep, params["wm"], precision=hi) + params["bm"]       # (B,3)
        sraw = jnp.dot(rep, params["ws"], precision=hi) + params["bs"]        # (B,6)
        scales = jnp.where(sraw > 0, sraw, jnp.expm1(sraw)) + 1.0
        alpha = jnp.clip(sp.reshape(-1, 1), 0.0, 1.0) ** power
        iso = jnp.array([base_sigma, 0.0, base_sigma, 0.0, 0.0, base_sigma])[None, :]
        bl = alpha * scales + (1.0 - alpha) * iso
        softplus = lambda v: jnp.logaddexp(v, 0.0)
        l00, l10, l11 = softplus(bl[:, 0]), bl[:, 1], softplus(bl[:, 2])
        l20, l21, l22 = bl[:, 3], bl[:, 4], softplus(bl[:, 5])
        d_, h_, w_ = image_shape
        zc = jnp.arange(d_, dtype=jnp.float32) - (d_ - 1) / 2.0
        yc = jnp.arange(h_, dtype=jnp.float32) - (h_ - 1) / 2.0
        xc = jnp.arange(w_, dtype=jnp.float32) - (w_ - 1) / 2.0
        zz = jnp.broadcast_to(zc[:, None, None], (d_, h_, w_)).reshape(-1)
        yy = jnp.broadcast_to(yc[None, :, None], (d_, h_, w_)).reshape(-1)
        xx = jnp.broadcast_to(xc[None, None, :], (d_, h_, w_)).reshape(-1)
        dx = xx[None, :] - means[:, 0:1]
        dy = yy[None, :] - means[:, 1:2]
        dz = zz[None, :] - means[:, 2:3]
        y0 = dx / l00[:, None]
        y1 = (dy - l10[:, None] * y0) / l11[:, None]
        y2 = (dz - l20[:, None] * y0 - l21[:, None] * y1) / l22[:, None]
        maha = y0 ** 2 + y1 ** 2 + y2 ** 2
        logdet = jnp.log(l00) + jnp.log(l11) + jnp.log(l22)
        logp = -0.5 * maha - 1.5 * jnp.log(2.0 * jnp.pi) - logdet[:, None]
        logp = logp - logp.max(axis=1, keepdims=True)
        p = jnp.exp(logp)
        return p / (p.sum(axis=1, keepdims=True) + 1e-10)

    ref = reference(representation, signal_prob)

    assert profiles.shape == (B, image_shape[0] * image_shape[1] * image_shape[2])
    assert bool(jnp.all(jnp.isfinite(profiles)))
    assert bool(jnp.all(jnp.abs(jnp.sum(profiles, axis=1) - 1.0) < 1e-3))
    assert float(jnp.max(jnp.abs(profiles - ref))) < 2e-3
    print("KERNEL_OK")
</pallas_src>

<mosaic_0001>
module attributes {stable_mosaic.version = 11 : i64} {
  func.func @_mvn_profile_kernel(%arg0: i32, %arg1: memref<8x32xf32, #tpu.memory_space<vmem>>, %arg2: memref<8x1xf32, #tpu.memory_space<vmem>>, %arg3: memref<32x9xf32, #tpu.memory_space<vmem>>, %arg4: memref<1x9xf32, #tpu.memory_space<vmem>>, %arg5: memref<16x1408xf32, #tpu.memory_space<vmem>>, %arg6: memref<8x1408xf32, #tpu.memory_space<vmem>>, %arg7: memref<8x16xf32, #tpu.memory_space<vmem>>) attributes {dimension_semantics = [#tpu.dimension_semantics<parallel>], iteration_bounds = array<i64: 1>, scalar_prefetch = 0 : i64, scratch_operands = 1 : i64, tpu.core_type = #tpu.core_type<tc>, window_params = [{transform_indices = @transform_0, window_bounds = array<i64: 8, 32>}, {transform_indices = @transform_1, window_bounds = array<i64: 8, 1>}, {pipeline_mode = #tpu.pipeline_mode<synchronous>, transform_indices = @transform_2, window_bounds = array<i64: 32, 9>}, {pipeline_mode = #tpu.pipeline_mode<synchronous>, transform_indices = @transform_3, window_bounds = array<i64: 1, 9>}, {pipeline_mode = #tpu.pipeline_mode<synchronous>, transform_indices = @transform_4, window_bounds = array<i64: 16, 1408>}, {transform_indices = @transform_5, window_bounds = array<i64: 8, 1408>}]} {
    %c0 = arith.constant 0 : index
    %c0_0 = arith.constant 0 : index
    %0 = vector.load %arg1[%c0, %c0_0] : memref<8x32xf32, #tpu.memory_space<vmem>>, vector<8x32xf32>
    %c0_1 = arith.constant 0 : index
    %c0_2 = arith.constant 0 : index
    %1 = vector.load %arg3[%c0_1, %c0_2] : memref<32x9xf32, #tpu.memory_space<vmem>>, vector<32x9xf32>
    %cst = arith.constant dense<0.000000e+00> : vector<8x9xf32>
    %2 = tpu.matmul %0, %1, %cst {dimension_numbers = #tpu.dot_dimension_numbers<[1], [0], [0], [1], [0, 0, 1, 1], [], []>} : vector<8x32xf32>, vector<32x9xf32>, vector<8x9xf32> -> vector<8x9xf32>
    %c0_3 = arith.constant 0 : index
    %c0_4 = arith.constant 0 : index
    %3 = vector.load %arg4[%c0_3, %c0_4] : memref<1x9xf32, #tpu.memory_space<vmem>>, vector<1x9xf32>
    %4 = vector.broadcast %3 : vector<1x9xf32> to vector<8x9xf32>
    %5 = arith.addf %2, %4 : vector<8x9xf32>
    %6 = vector.extract_strided_slice %5 {offsets = [0, 0], sizes = [8, 1], strides = [1, 1]} : vector<8x9xf32> to vector<8x1xf32>
    %7 = vector.extract_strided_slice %5 {offsets = [0, 1], sizes = [8, 1], strides = [1, 1]} : vector<8x9xf32> to vector<8x1xf32>
    %8 = vector.extract_strided_slice %5 {offsets = [0, 2], sizes = [8, 1], strides = [1, 1]} : vector<8x9xf32> to vector<8x1xf32>
    %9 = vector.extract_strided_slice %5 {offsets = [0, 3], sizes = [8, 6], strides = [1, 1]} : vector<8x9xf32> to vector<8x6xf32>
    %cst_5 = arith.constant 0.000000e+00 : f32
    %10 = vector.broadcast %cst_5 : f32 to vector<8x6xf32>
    %11 = arith.cmpf ogt, %9, %10 : vector<8x6xf32>
    %12 = math.exp %9 : vector<8x6xf32>
    %cst_6 = arith.constant 1.000000e+00 : f32
    %13 = vector.broadcast %cst_6 : f32 to vector<8x6xf32>
    %14 = arith.subf %12, %13 : vector<8x6xf32>
    %15 = arith.select %11, %9, %14 : vector<8x6xi1>, vector<8x6xf32>
    %cst_7 = arith.constant 1.000000e+00 : f32
    %16 = vector.broadcast %cst_7 : f32 to vector<8x6xf32>
    %17 = arith.addf %15, %16 : vector<8x6xf32>
    %c0_8 = arith.constant 0 : index
    %c0_9 = arith.constant 0 : index
    %18 = vector.load %arg2[%c0_8, %c0_9] : memref<8x1xf32, #tpu.memory_space<vmem>>, vector<8x1xf32>
    %cst_10 = arith.constant 0.000000e+00 : f32
    %cst_11 = arith.constant 1.000000e+00 : f32
    %19 = vector.broadcast %cst_10 : f32 to vector<8x1xf32>
    %20 = arith.maximumf %19, %18 : vector<8x1xf32>
    %21 = vector.broadcast %cst_11 : f32 to vector<8x1xf32>
    %22 = arith.minimumf %21, %20 : vector<8x1xf32>
    %23 = arith.mulf %22, %22 : vector<8x1xf32>
    %24 = arith.mulf %22, %23 : vector<8x1xf32>
    %cst_12 = arith.constant 1.000000e+00 : f32
    %25 = vector.broadcast %cst_12 : f32 to vector<8x1xf32>
    %26 = arith.subf %25, %24 : vector<8x1xf32>
    %cst_13 = arith.constant 5.000000e+00 : f32
    %27 = vector.broadcast %cst_13 : f32 to vector<8x1xf32>
    %28 = arith.mulf %26, %27 : vector<8x1xf32>
    %29 = vector.extract_strided_slice %17 {offsets = [0, 0], sizes = [8, 1], strides = [1, 1]} : vector<8x6xf32> to vector<8x1xf32>
    %30 = arith.mulf %24, %29 : vector<8x1xf32>
    %31 = arith.addf %30, %28 : vector<8x1xf32>
    %cst_14 = arith.constant 0.000000e+00 : f32
    %32 = vector.broadcast %cst_14 : f32 to vector<8x1xf32>
    %33 = arith.maximumf %31, %32 : vector<8x1xf32>
    %34 = math.absf %31 : vector<8x1xf32>
    %cst_15 = arith.constant 0.000000e+00 : f32
    %35 = vector.broadcast %cst_15 : f32 to vector<8x1xf32>
    %36 = arith.subf %35, %34 : vector<8x1xf32>
    %37 = math.exp %36 : vector<8x1xf32>
    %cst_16 = arith.constant 1.000000e+00 : f32
    %38 = vector.broadcast %cst_16 : f32 to vector<8x1xf32>
    %39 = arith.addf %38, %37 : vector<8x1xf32>
    %40 = math.log %39 : vector<8x1xf32>
    %41 = arith.addf %33, %40 : vector<8x1xf32>
    %42 = vector.extract_strided_slice %17 {offsets = [0, 1], sizes = [8, 1], strides = [1, 1]} : vector<8x6xf32> to vector<8x1xf32>
    %43 = arith.mulf %24, %42 : vector<8x1xf32>
    %44 = vector.extract_strided_slice %17 {offsets = [0, 2], sizes = [8, 1], strides = [1, 1]} : vector<8x6xf32> to vector<8x1xf32>
    %45 = arith.mulf %24, %44 : vector<8x1xf32>
    %46 = arith.addf %45, %28 : vector<8x1xf32>
    %cst_17 = arith.constant 0.000000e+00 : f32
    %47 = vector.broadcast %cst_17 : f32 to vector<8x1xf32>
    %48 = arith.maximumf %46, %47 : vector<8x1xf32>
    %49 = math.absf %46 : vector<8x1xf32>
    %cst_18 = arith.constant 0.000000e+00 : f32
    %50 = vector.broadcast %cst_18 : f32 to vector<8x1xf32>
    %51 = arith.subf %50, %49 : vector<8x1xf32>
    %52 = math.exp %51 : vector<8x1xf32>
    %cst_19 = arith.constant 1.000000e+00 : f32
    %53 = vector.broadcast %cst_19 : f32 to vector<8x1xf32>
    %54 = arith.addf %53, %52 : vector<8x1xf32>
    %55 = math.log %54 : vector<8x1xf32>
    %56 = arith.addf %48, %55 : vector<8x1xf32>
    %57 = vector.extract_strided_slice %17 {offsets = [0, 3], sizes = [8, 1], strides = [1, 1]} : vector<8x6xf32> to vector<8x1xf32>
    %58 = arith.mulf %24, %57 : vector<8x1xf32>
    %59 = vector.extract_strided_slice %17 {offsets = [0, 4], sizes = [8, 1], strides = [1, 1]} : vector<8x6xf32> to vector<8x1xf32>
    %60 = arith.mulf %24, %59 : vector<8x1xf32>
    %61 = vector.extract_strided_slice %17 {offsets = [0, 5], sizes = [8, 1], strides = [1, 1]} : vector<8x6xf32> to vector<8x1xf32>
    %62 = arith.mulf %24, %61 : vector<8x1xf32>
    %63 = arith.addf %62, %28 : vector<8x1xf32>
    %cst_20 = arith.constant 0.000000e+00 : f32
    %64 = vector.broadcast %cst_20 : f32 to vector<8x1xf32>
    %65 = arith.maximumf %63, %64 : vector<8x1xf32>
    %66 = math.absf %63 : vector<8x1xf32>
    %cst_21 = arith.constant 0.000000e+00 : f32
    %67 = vector.broadcast %cst_21 : f32 to vector<8x1xf32>
    %68 = arith.subf %67, %66 : vector<8x1xf32>
    %69 = math.exp %68 : vector<8x1xf32>
    %cst_22 = arith.constant 1.000000e+00 : f32
    %70 = vector.broadcast %cst_22 : f32 to vector<8x1xf32>
    %71 = arith.addf %70, %69 : vector<8x1xf32>
    %72 = math.log %71 : vector<8x1xf32>
    %73 = arith.addf %65, %72 : vector<8x1xf32>
    %cst_23 = arith.constant 1.000000e+00 : f32
    %74 = vector.broadcast %cst_23 : f32 to vector<8x1xf32>
    %75 = arith.divf %74, %41 : vector<8x1xf32>
    %cst_24 = arith.constant 1.000000e+00 : f32
    %76 = vector.broadcast %cst_24 : f32 to vector<8x1xf32>
    %77 = arith.divf %76, %56 : vector<8x1xf32>
    %cst_25 = arith.constant 1.000000e+00 : f32
    %78 = vector.broadcast %cst_25 : f32 to vector<8x1xf32>
    %79 = arith.divf %78, %73 : vector<8x1xf32>
    %80 = arith.mulf %43, %75 : vector<8x1xf32>
    %cst_26 = arith.constant 0.000000e+00 : f32
    %81 = vector.broadcast %cst_26 : f32 to vector<8x1xf32>
    %82 = arith.subf %81, %80 : vector<8x1xf32>
    %83 = arith.mulf %82, %77 : vector<8x1xf32>
    %84 = arith.mulf %60, %77 : vector<8x1xf32>
    %cst_27 = arith.constant 0.000000e+00 : f32
    %85 = vector.broadcast %cst_27 : f32 to vector<8x1xf32>
    %86 = arith.subf %85, %84 : vector<8x1xf32>
    %87 = arith.mulf %86, %79 : vector<8x1xf32>
    %88 = arith.mulf %43, %60 : vector<8x1xf32>
    %89 = arith.mulf %58, %56 : vector<8x1xf32>
    %90 = arith.subf %88, %89 : vector<8x1xf32>
    %91 = arith.mulf %75, %77 : vector<8x1xf32>
    %92 = arith.mulf %91, %79 : vector<8x1xf32>
    %93 = arith.mulf %90, %92 : vector<8x1xf32>
    %94 = arith.mulf %75, %75 : vector<8x1xf32>
    %95 = arith.mulf %83, %83 : vector<8x1xf32>
    %96 = arith.addf %94, %95 : vector<8x1xf32>
    %97 = arith.mulf %93, %93 : vector<8x1xf32>
    %98 = arith.addf %96, %97 : vector<8x1xf32>
    %99 = arith.mulf %83, %77 : vector<8x1xf32>
    %100 = arith.mulf %93, %87 : vector<8x1xf32>
    %101 = arith.addf %99, %100 : vector<8x1xf32>
    %102 = arith.mulf %93, %79 : vector<8x1xf32>
    %103 = arith.mulf %77, %77 : vector<8x1xf32>
    %104 = arith.mulf %87, %87 : vector<8x1xf32>
    %105 = arith.addf %103, %104 : vector<8x1xf32>
    %106 = arith.mulf %87, %79 : vector<8x1xf32>
    %107 = arith.mulf %79, %79 : vector<8x1xf32>
    %108 = arith.mulf %98, %6 : vector<8x1xf32>
    %109 = arith.mulf %101, %7 : vector<8x1xf32>
    %110 = arith.addf %108, %109 : vector<8x1xf32>
    %111 = arith.mulf %102, %8 : vector<8x1xf32>
    %112 = arith.addf %110, %111 : vector<8x1xf32>
    %113 = arith.mulf %101, %6 : vector<8x1xf32>
    %114 = arith.mulf %105, %7 : vector<8x1xf32>
    %115 = arith.addf %113, %114 : vector<8x1xf32>
    %116 = arith.mulf %106, %8 : vector<8x1xf32>
    %117 = arith.addf %115, %116 : vector<8x1xf32>
    %118 = arith.mulf %102, %6 : vector<8x1xf32>
    %119 = arith.mulf %106, %7 : vector<8x1xf32>
    %120 = arith.addf %118, %119 : vector<8x1xf32>
    %121 = arith.mulf %107, %8 : vector<8x1xf32>
    %122 = arith.addf %120, %121 : vector<8x1xf32>
    %cst_28 = arith.constant 0.000000e+00 : f32
    %123 = vector.broadcast %cst_28 : f32 to vector<8x16xf32>
    %c0_29 = arith.constant 0 : index
    %c0_30 = arith.constant 0 : index
    %124 = vector.load %arg7[%c0_29, %c0_30] : memref<8x16xf32, #tpu.memory_space<vmem>>, vector<8x16xf32>
    tpu.vector_store %arg7[%c0_29, %c0_30], %123 {strides = array<i32>} : memref<8x16xf32, #tpu.memory_space<vmem>>, vector<8x16xf32>,
    %cst_31 = arith.constant 5.000000e-01 : f32
    %125 = vector.broadcast %cst_31 : f32 to vector<8x1xf32>
    %126 = arith.mulf %125, %98 : vector<8x1xf32>
    %c0_32 = arith.constant 0 : index
    %c0_33 = arith.constant 0 : index
    %127 = vector.load %arg7[%c0_32, %c0_33] : memref<8x16xf32, #tpu.memory_space<vmem>>, vector<8x1xf32>
    tpu.vector_store %arg7[%c0_32, %c0_33], %126 {strides = array<i32>} : memref<8x16xf32, #tpu.memory_space<vmem>>, vector<8x1xf32>,
    %cst_34 = arith.constant 5.000000e-01 : f32
    %128 = vector.broadcast %cst_34 : f32 to vector<8x1xf32>
    %129 = arith.mulf %128, %105 : vector<8x1xf32>
    %c0_35 = arith.constant 0 : index
    %c1 = arith.constant 1 : index
    %130 = vector.load %arg7[%c0_35, %c1] : memref<8x16xf32, #tpu.memory_space<vmem>>, vector<8x1xf32>
    tpu.vector_store %arg7[%c0_35, %c1], %129 {strides = array<i32>} : memref<8x16xf32, #tpu.memory_space<vmem>>, vector<8x1xf32>,
    %cst_36 = arith.constant 5.000000e-01 : f32
    %131 = vector.broadcast %cst_36 : f32 to vector<8x1xf32>
    %132 = arith.mulf %131, %107 : vector<8x1xf32>
    %c0_37 = arith.constant 0 : index
    %c2 = arith.constant 2 : index
    %133 = vector.load %arg7[%c0_37, %c2] : memref<8x16xf32, #tpu.memory_space<vmem>>, vector<8x1xf32>
    tpu.vector_store %arg7[%c0_37, %c2], %132 {strides = array<i32>} : memref<8x16xf32, #tpu.memory_space<vmem>>, vector<8x1xf32>,
    %c0_38 = arith.constant 0 : index
    %c3 = arith.constant 3 : index
    %134 = vector.load %arg7[%c0_38, %c3] : memref<8x16xf32, #tpu.memory_space<vmem>>, vector<8x1xf32>
    tpu.vector_store %arg7[%c0_38, %c3], %101 {strides = array<i32>} : memref<8x16xf32, #tpu.memory_space<vmem>>, vector<8x1xf32>,
    %c0_39 = arith.constant 0 : index
    %c4 = arith.constant 4 : index
    %135 = vector.load %arg7[%c0_39, %c4] : memref<8x16xf32, #tpu.memory_space<vmem>>, vector<8x1xf32>
    tpu.vector_store %arg7[%c0_39, %c4], %102 {strides = array<i32>} : memref<8x16xf32, #tpu.memory_space<vmem>>, vector<8x1xf32>,
    %c0_40 = arith.constant 0 : index
    %c5 = arith.constant 5 : index
    %136 = vector.load %arg7[%c0_40, %c5] : memref<8x16xf32, #tpu.memory_space<vmem>>, vector<8x1xf32>
    tpu.vector_store %arg7[%c0_40, %c5], %106 {strides = array<i32>} : memref<8x16xf32, #tpu.memory_space<vmem>>, vector<8x1xf32>,
    %cst_41 = arith.constant 0.000000e+00 : f32
    %137 = vector.broadcast %cst_41 : f32 to vector<8x1xf32>
    %138 = arith.subf %137, %112 : vector<8x1xf32>
    %c0_42 = arith.constant 0 : index
    %c6 = arith.constant 6 : index
    %139 = vector.load %arg7[%c0_42, %c6] : memref<8x16xf32, #tpu.memory_space<vmem>>, vector<8x1xf32>
    tpu.vector_store %arg7[%c0_42, %c6], %138 {strides = array<i32>} : memref<8x16xf32, #tpu.memory_space<vmem>>, vector<8x1xf32>,
    %cst_43 = arith.constant 0.000000e+00 : f32
    %140 = vector.broadcast %cst_43 : f32 to vector<8x1xf32>
    %141 = arith.subf %140, %117 : vector<8x1xf32>
    %c0_44 = arith.constant 0 : index
    %c7 = arith.constant 7 : index
    %142 = vector.load %arg7[%c0_44, %c7] : memref<8x16xf32, #tpu.memory_space<vmem>>, vector<8x1xf32>
    tpu.vector_store %arg7[%c0_44, %c7], %141 {strides = array<i32>} : memref<8x16xf32, #tpu.memory_space<vmem>>, vector<8x1xf32>,
    %cst_45 = arith.constant 0.000000e+00 : f32
    %143 = vector.broadcast %cst_45 : f32 to vector<8x1xf32>
    %144 = arith.subf %143, %122 : vector<8x1xf32>
    %c0_46 = arith.constant 0 : index
    %c8 = arith.constant 8 : index
    %145 = vector.load %arg7[%c0_46, %c8] : memref<8x16xf32, #tpu.memory_space<vmem>>, vector<8x1xf32>
    tpu.vector_store %arg7[%c0_46, %c8], %144 {strides = array<i32>} : memref<8x16xf32, #tpu.memory_space<vmem>>, vector<8x1xf32>,
    %146 = arith.mulf %6, %112 : vector<8x1xf32>
    %147 = arith.mulf %7, %117 : vector<8x1xf32>
    %148 = arith.addf %146, %147 : vector<8x1xf32>
    %149 = arith.mulf %8, %122 : vector<8x1xf32>
    %150 = arith.addf %148, %149 : vector<8x1xf32>
    %cst_47 = arith.constant 5.000000e-01 : f32
    %151 = vector.broadcast %cst_47 : f32 to vector<8x1xf32>
    %152 = arith.mulf %151, %150 : vector<8x1xf32>
    %c0_48 = arith.constant 0 : index
    %c9 = arith.constant 9 : index
    %153 = vector.load %arg7[%c0_48, %c9] : memref<8x16xf32, #tpu.memory_space<vmem>>, vector<8x1xf32>
    tpu.vector_store %arg7[%c0_48, %c9], %152 {strides = array<i32>} : memref<8x16xf32, #tpu.memory_space<vmem>>, vector<8x1xf32>,
    %cst_49 = arith.constant 1.000000e+00 : f32
    %154 = vector.broadcast %cst_49 : f32 to vector<8x1xf32>
    %c0_50 = arith.constant 0 : index
    %c10 = arith.constant 10 : index
    %155 = vector.load %arg7[%c0_50, %c10] : memref<8x16xf32, #tpu.memory_space<vmem>>, vector<8x1xf32>
    tpu.vector_store %arg7[%c0_50, %c10], %154 {strides = array<i32>} : memref<8x16xf32, #tpu.memory_space<vmem>>, vector<8x1xf32>,
    %c0_51 = arith.constant 0 : index
    %c0_52 = arith.constant 0 : index
    %156 = vector.load %arg7[%c0_51, %c0_52] : memref<8x16xf32, #tpu.memory_space<vmem>>, vector<8x16xf32>
    %157 = arith.truncf %156 : vector<8x16xf32> to vector<8x16xbf16>
    %158 = arith.extf %157 : vector<8x16xbf16> to vector<8x16xf32>
    %159 = arith.subf %156, %158 : vector<8x16xf32>
    %c0_53 = arith.constant 0 : index
    %c0_54 = arith.constant 0 : index
    %160 = vector.load %arg5[%c0_53, %c0_54] : memref<16x1408xf32, #tpu.memory_space<vmem>>, vector<16x1408xf32>
    %cst_55 = arith.constant dense<0.000000e+00> : vector<8x1408xf32>
    %161 = tpu.matmul %158, %160, %cst_55 {dimension_numbers = #tpu.dot_dimension_numbers<[1], [0], [0], [1], [0, 0, 1, 1], [], []>} : vector<8x16xf32>, vector<16x1408xf32>, vector<8x1408xf32> -> vector<8x1408xf32>
    %cst_56 = arith.constant dense<0.000000e+00> : vector<8x1408xf32>
    %162 = tpu.matmul %159, %160, %cst_56 {dimension_numbers = #tpu.dot_dimension_numbers<[1], [0], [0], [1], [0, 0, 1, 1], [], []>} : vector<8x16xf32>, vector<16x1408xf32>, vector<8x1408xf32> -> vector<8x1408xf32>
    %163 = arith.addf %161, %162 : vector<8x1408xf32>
    %cst_57 = arith.constant dense<0x7F800000> : vector<8xf32>
    %164 = vector.multi_reduction <minimumf>, %163, %cst_57 [1] : vector<8x1408xf32> to vector<8xf32>
    %165 = vector.shape_cast %164 : vector<8xf32> to vector<8x1xf32>
    %166 = vector.broadcast %165 : vector<8x1xf32> to vector<8x1408xf32>
    %167 = arith.subf %166, %163 : vector<8x1408xf32>
    %168 = math.exp %167 : vector<8x1408xf32>
    %cst_58 = arith.constant dense<0.000000e+00> : vector<8xf32>
    %169 = vector.multi_reduction <add>, %168, %cst_58 [1] : vector<8x1408xf32> to vector<8xf32>
    %170 = vector.shape_cast %169 : vector<8xf32> to vector<8x1xf32>
    %cst_59 = arith.constant 1.000000e-10 : f32
    %171 = vector.broadcast %cst_59 : f32 to vector<8x1xf32>
    %172 = arith.addf %170, %171 : vector<8x1xf32>
    %cst_60 = arith.constant 1.000000e+00 : f32
    %173 = vector.broadcast %cst_60 : f32 to vector<8x1xf32>
    %174 = arith.divf %173, %172 : vector<8x1xf32>
    %175 = vector.broadcast %174 : vector<8x1xf32> to vector<8x1408xf32>
    %176 = arith.mulf %168, %175 : vector<8x1408xf32>
    %c0_61 = arith.constant 0 : index
    %c0_62 = arith.constant 0 : index
    %177 = vector.load %arg6[%c0_61, %c0_62] : memref<8x1408xf32, #tpu.memory_space<vmem>>, vector<8x1408xf32>
    tpu.vector_store %arg6[%c0_61, %c0_62], %176 {strides = array<i32>} : memref<8x1408xf32, #tpu.memory_space<vmem>>, vector<8x1408xf32>,
    return
  }
  func.func @transform_0(%arg0: i32) -> (i32, i32) {
    %c0_i32 = arith.constant 0 : i32
    %c0_i32_0 = arith.constant 0 : i32
    return %arg0, %c0_i32 : i32, i32
  }
  func.func @transform_1(%arg0: i32) -> (i32, i32) {
    %c0_i32 = arith.constant 0 : i32
    %c0_i32_0 = arith.constant 0 : i32
    return %arg0, %c0_i32 : i32, i32
  }
  func.func @transform_2(%arg0: i32) -> (i32, i32) {
    %c0_i32 = arith.constant 0 : i32
    %c0_i32_0 = arith.constant 0 : i32
    %c0_i32_1 = arith.constant 0 : i32
    return %c0_i32, %c0_i32_0 : i32, i32
  }
  func.func @transform_3(%arg0: i32) -> (i32, i32) {
    %c0_i32 = arith.constant 0 : i32
    %c0_i32_0 = arith.constant 0 : i32
    %c0_i32_1 = arith.constant 0 : i32
    return %c0_i32, %c0_i32_0 : i32, i32
  }
  func.func @transform_4(%arg0: i32) -> (i32, i32) {
    %c0_i32 = arith.constant 0 : i32
    %c0_i32_0 = arith.constant 0 : i32
    %c0_i32_1 = arith.constant 0 : i32
    return %c0_i32, %c0_i32_0 : i32, i32
  }
  func.func @transform_5(%arg0: i32) -> (i32, i32) {
    %c0_i32 = arith.constant 0 : i32
    %c0_i32_0 = arith.constant 0 : i32
    return %arg0, %c0_i32 : i32, i32
  }
}

</mosaic_0001>

<llo_original>
// kernel: tpu_custom_call.1
$region0: #{tpu_custom_call.1}
  #allocation0 [shape = 'u32[]', space=smem, size = 0x4, offset = 0x4, fixed_abs, tag = 'smem constant byte address 0x4 - core index']
  #allocation1 [shape = 'u32[144,128]{1,0:T(1,128)}', space=vmem, size = 0x12000, scoped, tag = 'internal scratch']
  #allocation2 [shape = 'f32[8,16]{1,0:T(8,128)}', space=vmem, size = 0x1000, scoped, tag = 'scratch operand']
  %s0 = inlined_call_operand.vmem [shape: f32[8,32], index: 0, kind: input, shape index: {}]
  %s1 = inlined_call_operand.vmem [shape: f32[8,1], index: 1, kind: input, shape index: {}]
  %s2 = inlined_call_operand.vmem [shape: f32[32,9], index: 2, kind: input, shape index: {}]
  %s3 = inlined_call_operand.vmem [shape: f32[1,9], index: 3, kind: input, shape index: {}]
  %s4 = inlined_call_operand.hbm [shape: f32[16,1408], index: 4, kind: input, shape index: {}]
  %s5 = inlined_call_operand.hbm [shape: f32[8,1408], index: 5, kind: output, shape index: {}]
  %s6 = sld [smem:[#allocation0]]
  $region34: #{tpu_custom_call.1} parent=0
    _
  %s8 = ssub.s32 1, %s6
  %s9 = scalar_select 0, %s8, %s6
  $region1: #{tpu_custom_call.1} parent=0
    #allocation3 [shape = 'u8[90112]{0}', space=vmem, size = 0x16000, scoped, tag = 'input window, operand 4, single buffered']
    #allocation4 [shape = 's32[1]{0}', space=sflag, size = 0x4, scoped, tag = 'scoped memory for tpu_custom_call.1']
    #allocation5 [shape = 's32[1]{0}', space=sflag, size = 0x4, scoped, tag = 'scoped memory for tpu_custom_call.1']
    #allocation6 [shape = 'u8[45056]{0}', space=vmem, size = 0xb000, scoped, tag = 'output window, operand 0, single buffered']
    %10 = vsyncpa [#allocation4], 0
    %11 = vsyncpa [#allocation5], 0
    // Predicated region
    $region2: #{tpu_custom_call.1} parent=1 // pred_check
      _
    $region3: #{tpu_custom_call.1} parent=1 // pred_check_branch
      %13 = sbr.rel (0) target = $region5
    $region4: #{tpu_custom_call.1} parent=1 // pred_region
      _
    $region5: #{tpu_custom_call.1} parent=1 // pred_fallthru
      _
    // Predicated region
    $region6: #{tpu_custom_call.1} parent=1 // pred_check
      _
    $region7: #{tpu_custom_call.1} parent=1 // pred_check_branch
      %15 = sbr.rel (0) target = $region9
    $region8: #{tpu_custom_call.1} parent=1 // pred_region
      _
    $region9: #{tpu_custom_call.1} parent=1 // pred_fallthru
      _
    // Predicated region
    $region10: #{tpu_custom_call.1} parent=1 // pred_check
      _
    $region11: #{tpu_custom_call.1} parent=1 // pred_check_branch
      %17 = sbr.rel (0) target = $region13
    $region12: #{tpu_custom_call.1} parent=1 // pred_region
      _
    $region13: #{tpu_custom_call.1} parent=1 // pred_fallthru
      _
    // Predicated region
    $region14: #{tpu_custom_call.1} parent=1 // pred_check
      _
    $region15: #{tpu_custom_call.1} parent=1 // pred_check_branch
      %19 = sbr.rel (0) target = $region17
    $region16: #{tpu_custom_call.1} parent=1 // pred_region
      _
    $region17: #{tpu_custom_call.1} parent=1 // pred_fallthru
      _
    // Predicated region
    $region18: #{tpu_custom_call.1} parent=1 // pred_check
      _
    $region19: #{tpu_custom_call.1} parent=1 // pred_check_branch
      %21 = sbr.rel (0) target = $region21
    $region20: #{tpu_custom_call.1} parent=1 // pred_region
      %s23 = ssub.s32 2816, 2816
      %24 = vsyncadd [#allocation4], %s23
      %s25 = sshll.u32 [#allocation3], 4
      %s26 = int_to_ptr.vmem [resolvable:$true] %s25
      %31 = dma.hbm_to_vmem [thread:$0]  %s4, 2816, %s26, [#allocation4], 1408, 1408, 88
    $region21: #{tpu_custom_call.1} parent=1 // pred_fallthru
      _
    // Predicated region
    $region22: #{tpu_custom_call.1} parent=1 // pred_check
      _
    $region23: #{tpu_custom_call.1} parent=1 // pred_check_branch
      %33 = sbr.rel (0) target = $region25
    $region24: #{tpu_custom_call.1} parent=1 // pred_region
      %34 = dma.done [#allocation4], 2816
    $region25: #{tpu_custom_call.1} parent=1 // pred_fallthru
      _
    %v35 = vld [vmem:[%s0] sm:$0xff]
    %v36 = vld [vmem:[%s2] sm:$0xff]
    %v37 = vld [vmem:[%s2 + $0x8] sm:$0xff]
    %v38 = vld [vmem:[%s2 + $0x10] sm:$0xff]
    %v39 = vld [vmem:[%s2 + $0x18] sm:$0xff]
    %v40 = vld [vmem:[%s3] sm:$0x1]
    %v42 = vlaneseq
    %v43 = vshrl.u32 %v42, 7
    %v44 = vsub.s32 0, %v43
    %v45 = vrot.slane %v40, %v44
    %vm47 = vcmask 261120
    %v49 = vsel %vm47, %v35, 0
    %51 = vmatprep.subr.mxu0 0.0
    %52 = vmatpush1.msra.mxu0 0.0
    %53 = vmatprep.subr.mxu0 0.0
    %54 = vmatpush1.msra.mxu0 0.0
    %55 = vmatprep.subr.mxu0 0.0
    %56 = vmatpush1.msra.mxu0 0.0
    %57 = vmatprep.subr.mxu0 0.0
    %58 = vmatpush1.msra.mxu0 0.0
    %59 = vmatprep.subr.mxu0 0.0
    %60 = vmatpush1.msra.mxu0 0.0
    %61 = vmatprep.subr.mxu0 0.0
    %62 = vmatpush1.msra.mxu0 0.0
    %63 = vmatprep.subr.mxu0 0.0
    %64 = vmatpush1.msra.mxu0 0.0
    %65 = vmatprep.subr.mxu0 0.0
    %66 = vmatpush1.msra.mxu0 0.0
    %67 = vmatprep.subr.mxu0 0.0
    %68 = vmatpush1.msra.mxu0 0.0
    %69 = vmatprep.subr.mxu0 0.0
    %70 = vmatpush1.msra.mxu0 0.0
    %71 = vmatprep.subr.mxu0 0.0
    %72 = vmatpush1.msra.mxu0 0.0
    %73 = vmatprep.subr.mxu0 0.0
    %74 = vmatpush1.msra.mxu0 0.0
    %75 = vmatprep.subr.mxu0 0.0
    %76 = vmatpush1.msra.mxu0 %v39
    %77 = vmatprep.subr.mxu0 0.0
    %78 = vmatpush1.msra.mxu0 %v38
    %79 = vmatprep.subr.mxu0 0.0
    %80 = vmatpush1.msra.mxu0 %v37
    %81 = vmatprep.subr.mxu0 0.0
    %82 = vmatpush1.msra.mxu0 %v36
    %83 = vmatprep.subr.mxu0 0.0
    %84 = vmatpush2.msra.mxu0 0.0
    %85 = vmatprep.subr.mxu0 0.0
    %86 = vmatpush2.msra.mxu0 0.0
    %87 = vmatprep.subr.mxu0 0.0
    %88 = vmatpush2.msra.mxu0 0.0
    %89 = vmatprep.subr.mxu0 0.0
    %90 = vmatpush2.msra.mxu0 0.0
    %91 = vmatprep.subr.mxu0 0.0
    %92 = vmatpush2.msra.mxu0 0.0
    %93 = vmatprep.subr.mxu0 0.0
    %94 = vmatpush2.msra.mxu0 0.0
    %95 = vmatprep.subr.mxu0 0.0
    %96 = vmatpush2.msra.mxu0 0.0
    %97 = vmatprep.subr.mxu0 0.0
    %98 = vmatpush2.msra.mxu0 0.0
    %99 = vmatprep.subr.mxu0 0.0
    %100 = vmatpush2.msra.mxu0 0.0
    %101 = vmatprep.subr.mxu0 0.0
    %102 = vmatpush2.msra.mxu0 0.0
    %103 = vmatprep.subr.mxu0 0.0
    %104 = vmatpush2.msra.mxu0 0.0
    %105 = vmatprep.subr.mxu0 0.0
    %106 = vmatpush2.msra.mxu0 0.0
    %107 = vmatprep.subr.mxu0 0.0
    %108 = vmatpush2.msra.mxu0 0.0
    %109 = vmatprep.subr.mxu0 0.0
    %110 = vmatpush2.msra.mxu0 0.0
    %111 = vmatprep.subr.mxu0 0.0
    %112 = vmatpush2.msra.mxu0 0.0
    %113 = vmatprep.subr.mxu0 0.0
    %114 = vmatpush2.msra.mxu0 0.0
    %115 = vmatprep.mubr.f32.mxu0 0.0
    %116 = vmatmul.mubr.f32.gmra.mxu0 %v49
    %v117 = vpop.f32.mrf.mxu0
    %v118 = vadd.f32 %v45, %v117
    %v119 = vpop.f32.mrf.mxu0
    %120 = vdwg.mxu0
    %vm121 = vcmp.gt.f32.partialorder %v118, 0.0
    %v122 = vmul.f32 %v118, 1.442695
    %v123 = vpow.pop %v122
    %v124 = vsub.f32 %v123, 1.0
    %v125 = vsel %vm121, %v118, %v124
    %v126 = vadd.f32 %v125, 1.0
    %v127 = vld [vmem:[%s1] sm:$0xff]
    %v128 = vmax.f32 %v127, 0.0
    %v129 = vmin.f32 %v128, 1.0
    %v130 = vmul.f32 %v129, %v129
    %v131 = vmul.f32 %v129, %v130
    %v132 = vsub.f32 1.0, %v131
    %v133 = vmul.f32 %v132, 5.0
    %135 = vrot.lane.b32.xlu0 %v126, 125
    %v136 = vpop.permute.xlu0 %135
    %v138 = vmul.f32 %v131, %v136
    %v139 = vadd.f32 %v138, %v133
    %v140 = vmax.f32 %v139, 0.0
    %v141 = vand.u32 2147483647, %v139
    %v142 = vsub.f32 0.0, %v141
    %v143 = vmul.f32 %v142, 1.442695
    %v144 = vpow.pop %v143
    %v145 = vadd.f32 %v144, 1.0
    %v146 = vlog2.pop %v145
    %v147 = vmul.f32 %v146, 0.6931472
    %v148 = vadd.f32 %v140, %v147
    %149 = vrot.lane.b32.xlu0 %v126, 124
    %v150 = vpop.permute.xlu0 %149
    %v152 = vmul.f32 %v131, %v150
    %153 = vrot.lane.b32.xlu0 %v126, 123
    %v154 = vpop.permute.xlu0 %153
    %v156 = vmul.f32 %v131, %v154
    %v157 = vadd.f32 %v156, %v133
    %v158 = vmax.f32 %v157, 0.0
    %v159 = vand.u32 2147483647, %v157
    %v160 = vsub.f32 0.0, %v159
    %v161 = vmul.f32 %v160, 1.442695
    %v162 = vpow.pop %v161
    %v163 = vadd.f32 %v162, 1.0
    %v164 = vlog2.pop %v163
    %v165 = vmul.f32 %v164, 0.6931472
    %v166 = vadd.f32 %v158, %v165
    %167 = vrot.lane.b32.xlu0 %v126, 122
    %v168 = vpop.permute.xlu0 %167
    %v170 = vmul.f32 %v131, %v168
    %171 = vrot.lane.b32.xlu0 %v126, 121
    %v172 = vpop.permute.xlu0 %171
    %v174 = vmul.f32 %v131, %v172
    %175 = vrot.lane.b32.xlu0 %v126, 120
    %v176 = vpop.permute.xlu0 %175
    %v178 = vmul.f32 %v131, %v176
    %v179 = vadd.f32 %v178, %v133
    %v180 = vmax.f32 %v179, 0.0
    %v181 = vand.u32 2147483647, %v179
    %v182 = vsub.f32 0.0, %v181
    %v183 = vmul.f32 %v182, 1.442695
    %v184 = vpow.pop %v183
    %v185 = vadd.f32 %v184, 1.0
    %v186 = vlog2.pop %v185
    %v187 = vmul.f32 %v186, 0.6931472
    %v188 = vadd.f32 %v180, %v187
    %v189 = vrcp.pop %v148
    %v190 = vmul.f32 1.0, %v189
    %v191 = vrcp.pop %v166
    %v192 = vmul.f32 1.0, %v191
    %v193 = vrcp.pop %v188
    %v194 = vmul.f32 1.0, %v193
    %v195 = vmul.f32 %v152, %v190
    %v196 = vsub.f32 0.0, %v195
    %v197 = vmul.f32 %v196, %v192
    %v198 = vmul.f32 %v174, %v192
    %v199 = vsub.f32 0.0, %v198
    %v200 = vmul.f32 %v199, %v194
    %v201 = vmul.f32 %v152, %v174
    %v202 = vmul.f32 %v170, %v166
    %v203 = vsub.f32 %v201, %v202
    %v204 = vmul.f32 %v190, %v192
    %v205 = vmul.f32 %v204, %v194
    %v206 = vmul.f32 %v203, %v205
    %v207 = vmul.f32 %v190, %v190
    %v208 = vmul.f32 %v197, %v197
    %v209 = vadd.f32 %v207, %v208
    %v210 = vmul.f32 %v206, %v206
    %v211 = vadd.f32 %v209, %v210
    %v212 = vmul.f32 %v197, %v192
    %v213 = vmul.f32 %v206, %v200
    %v214 = vadd.f32 %v212, %v213
    %v215 = vmul.f32 %v206, %v194
    %v216 = vmul.f32 %v192, %v192
    %v217 = vmul.f32 %v200, %v200
    %v218 = vadd.f32 %v216, %v217
    %v219 = vmul.f32 %v200, %v194
    %v220 = vmul.f32 %v194, %v194
    %v221 = vmul.f32 %v211, %v118
    %223 = vrot.lane.b32.xlu0 %v118, 127
    %v224 = vpop.permute.xlu0 %223
    %v226 = vmul.f32 %v214, %v224
    %v227 = vadd.f32 %v221, %v226
    %228 = vrot.lane.b32.xlu0 %v118, 126
    %v229 = vpop.permute.xlu0 %228
    %v231 = vmul.f32 %v215, %v229
    %v232 = vadd.f32 %v227, %v231
    %v233 = vmul.f32 %v214, %v118
    %v234 = vmul.f32 %v218, %v224
    %v235 = vadd.f32 %v233, %v234
    %v236 = vmul.f32 %v219, %v229
    %v237 = vadd.f32 %v235, %v236
    %v238 = vmul.f32 %v215, %v118
    %v239 = vmul.f32 %v219, %v224
    %v240 = vadd.f32 %v238, %v239
    %v241 = vmul.f32 %v220, %v229
    %v242 = vadd.f32 %v240, %v241
    %vm243 = vcmask 130048
    %244 = vst.msk [vmem:[#allocation2] sm:$0xff] %vm243, 0.0
    %v245 = vmul.f32 %v211, 0.5
    %vm246 = vcmask 7168
    %247 = vst.msk [vmem:[#allocation2] sm:$0xff] %vm246, %v245
    %v248 = vmul.f32 %v218, 0.5
    %250 = vrot.lane.b32.xlu0 %v248, 1
    %v251 = vpop.permute.xlu0 %250
    %vm253 = vcmask 15368
    %254 = vst.msk [vmem:[#allocation2] sm:$0xff] %vm253, %v251
    %v255 = vmul.f32 %v220, 0.5
    %257 = vrot.lane.b32.xlu0 %v255, 2
    %v258 = vpop.permute.xlu0 %257
    %vm260 = vcmask 23568
    %261 = vst.msk [vmem:[#allocation2] sm:$0xff] %vm260, %v258
    %263 = vrot.lane.b32.xlu0 %v214, 3
    %v264 = vpop.permute.xlu0 %263
    %vm266 = vcmask 31768
    %267 = vst.msk [vmem:[#allocation2] sm:$0xff] %vm266, %v264
    %269 = vrot.lane.b32.xlu0 %v215, 4
    %v270 = vpop.permute.xlu0 %269
    %vm272 = vcmask 39968
    %273 = vst.msk [vmem:[#allocation2] sm:$0xff] %vm272, %v270
    %275 = vrot.lane.b32.xlu0 %v219, 5
    %v276 = vpop.permute.xlu0 %275
    %vm278 = vcmask 48168
    %279 = vst.msk [vmem:[#allocation2] sm:$0xff] %vm278, %v276
    %v280 = vsub.f32 0.0, %v232
    %282 = vrot.lane.b32.xlu0 %v280, 6
    %v283 = vpop.permute.xlu0 %282
    %vm285 = vcmask 56368
    %286 = vst.msk [vmem:[#allocation2] sm:$0xff] %vm285, %v283
    %v287 = vsub.f32 0.0, %v237
    %289 = vrot.lane.b32.xlu0 %v287, 7
    %v290 = vpop.permute.xlu0 %289
    %vm292 = vcmask 64568
    %293 = vst.msk [vmem:[#allocation2] sm:$0xff] %vm292, %v290
    %v294 = vsub.f32 0.0, %v242
    %296 = vrot.lane.b32.xlu0 %v294, 8
    %v297 = vpop.permute.xlu0 %296
    %vm299 = vcmask 72768
    %300 = vst.msk [vmem:[#allocation2] sm:$0xff] %vm299, %v297
    %v301 = vmul.f32 %v118, %v232
    %303 = vrot.lane.b32.xlu0 %v237, 1
    %v304 = vpop.permute.xlu0 %303
    %v306 = vmul.f32 %v118, %v304
    %308 = vrot.lane.b32.xlu0 %v306, 127
    %v309 = vpop.permute.xlu0 %308
    %v311 = vadd.f32 %v301, %v309
    %313 = vrot.lane.b32.xlu0 %v242, 2
    %v314 = vpop.permute.xlu0 %313
    %v316 = vmul.f32 %v118, %v314
    %318 = vrot.lane.b32.xlu0 %v316, 126
    %v319 = vpop.permute.xlu0 %318
    %v321 = vadd.f32 %v311, %v319
    %v322 = vmul.f32 %v321, 0.5
    %324 = vrot.lane.b32.xlu0 %v322, 9
    %v325 = vpop.permute.xlu0 %324
    %vm327 = vcmask 80968
    %328 = vst.msk [vmem:[#allocation2] sm:$0xff] %vm327, %v325
    %vm329 = vcmask 89168
    %330 = vst.msk [vmem:[#allocation2] sm:$0xff] %vm329, 1.0
    %v331 = vld [vmem:[#allocation2] sm:$0xff]
    %v332 = vpack.c.bf16 %v331, %v331
    %v333 = vunpack.c.l.bf16 %v332
    %v334 = vsub.f32 %v331, %v333
    %v335 = vld [vmem:[#allocation3] sm:$0xff]
    %v336 = vld [vmem:[#allocation3 + $0x8] sm:$0xff]
    %v337 = vld [vmem:[#allocation3 + $0x10] sm:$0xff]
    %v338 = vld [vmem:[#allocation3 + $0x18] sm:$0xff]
    %v339 = vld [vmem:[#allocation3 + $0x20] sm:$0xff]
    %v340 = vld [vmem:[#allocation3 + $0x28] sm:$0xff]
    %v341 = vld [vmem:[#allocation3 + $0x30] sm:$0xff]
    %v342 = vld [vmem:[#allocation3 + $0x38] sm:$0xff]
    %v343 = vld [vmem:[#allocation3 + $0x40] sm:$0xff]
    %v344 = vld [vmem:[#allocation3 + $0x48] sm:$0xff]
    %v345 = vld [vmem:[#allocation3 + $0x50] sm:$0xff]
    %v346 = vld [vmem:[#allocation3 + $0x58] sm:$0xff]
    %v347 = vld [vmem:[#allocation3 + $0x60] sm:$0xff]
    %v348 = vld [vmem:[#allocation3 + $0x68] sm:$0xff]
    %v349 = vld [vmem:[#allocation3 + $0x70] sm:$0xff]
    %v350 = vld [vmem:[#allocation3 + $0x78] sm:$0xff]
    %v351 = vld [vmem:[#allocation3 + $0x80] sm:$0xff]
    %v352 = vld [vmem:[#allocation3 + $0x88] sm:$0xff]
    %v353 = vld [vmem:[#allocation3 + $0x90] sm:$0xff]
    %v354 = vld [vmem:[#allocation3 + $0x98] sm:$0xff]
    %v355 = vld [vmem:[#allocation3 + $0xa0] sm:$0xff]
    %v356 = vld [vmem:[#allocation3 + $0xa8] sm:$0xff]
    %v358 = vsel %vm243, %v334, 0
    %360 = vmatprep.subr.mxu0 0.0
    %361 = vmatpush1.msra.mxu0 0.0
    %362 = vmatprep.subr.mxu0 0.0
    %363 = vmatpush1.msra.mxu0 0.0
    %364 = vmatprep.subr.mxu0 0.0
    %365 = vmatpush1.msra.mxu0 0.0
    %366 = vmatprep.subr.mxu0 0.0
    %367 = vmatpush1.msra.mxu0 0.0
    %368 = vmatprep.subr.mxu0 0.0
    %369 = vmatpush1.msra.mxu0 0.0
    %370 = vmatprep.subr.mxu0 0.0
    %371 = vmatpush1.msra.mxu0 0.0
    %372 = vmatprep.subr.mxu0 0.0
    %373 = vmatpush1.msra.mxu0 0.0
    %374 = vmatprep.subr.mxu0 0.0
    %375 = vmatpush1.msra.mxu0 0.0
    %376 = vmatprep.subr.mxu0 0.0
    %377 = vmatpush1.msra.mxu0 0.0
    %378 = vmatprep.subr.mxu0 0.0
    %379 = vmatpush1.msra.mxu0 0.0
    %380 = vmatprep.subr.mxu0 0.0
    %381 = vmatpush1.msra.mxu0 0.0
    %382 = vmatprep.subr.mxu0 0.0
    %383 = vmatpush1.msra.mxu0 0.0
    %384 = vmatprep.subr.mxu0 0.0
    %385 = vmatpush1.msra.mxu0 0.0
    %386 = vmatprep.subr.mxu0 0.0
    %387 = vmatpush1.msra.mxu0 0.0
    %388 = vmatprep.subr.mxu0 %v347
    %389 = vmatpush1.msra.mxu0 %v346
    %390 = vmatprep.subr.mxu0 %v336
    %391 = vmatpush1.msra.mxu0 %v335
    %392 = vmatprep.subr.mxu0 0.0
    %393 = vmatpush2.msra.mxu0 0.0
    %394 = vmatprep.subr.mxu0 0.0
    %395 = vmatpush2.msra.mxu0 0.0
    %396 = vmatprep.subr.mxu0 0.0
    %397 = vmatpush2.msra.mxu0 0.0
    %398 = vmatprep.subr.mxu0 0.0
    %399 = vmatpush2.msra.mxu0 0.0
    %400 = vmatprep.subr.mxu0 0.0
    %401 = vmatpush2.msra.mxu0 0.0
    %402 = vmatprep.subr.mxu0 0.0
    %403 = vmatpush2.msra.mxu0 0.0
    %404 = vmatprep.subr.mxu0 0.0
    %405 = vmatpush2.msra.mxu0 0.0
    %406 = vmatprep.subr.mxu0 0.0
    %407 = vmatpush2.msra.mxu0 0.0
    %408 = vmatprep.subr.mxu0 0.0
    %409 = vmatpush2.msra.mxu0 0.0
    %410 = vmatprep.subr.mxu0 0.0
    %411 = vmatpush2.msra.mxu0 0.0
    %412 = vmatprep.subr.mxu0 0.0
    %413 = vmatpush2.msra.mxu0 0.0
    %414 = vmatprep.subr.mxu0 0.0
    %415 = vmatpush2.msra.mxu0 0.0
    %416 = vmatprep.subr.mxu0 0.0
    %417 = vmatpush2.msra.mxu0 0.0
    %418 = vmatprep.subr.mxu0 0.0
    %419 = vmatpush2.msra.mxu0 0.0
    %420 = vmatprep.subr.mxu0 0.0
    %421 = vmatpush2.msra.mxu0 0.0
    %422 = vmatprep.subr.mxu0 0.0
    %423 = vmatpush2.msra.mxu0 0.0
    %424 = vmatprep.mubr.f32.mxu0 0.0
    %425 = vmatmul.mubr.f32.gmra.mxu0 %v358
    %v426 = vpop.f32.mrf.mxu0
    %v427 = vadd.f32 0.0, %v426
    %v428 = vpop.f32.mrf.mxu0
    %v429 = vadd.f32 0.0, %v428
    %430 = vdwg.mxu0
    %431 = vmatprep.subr.mxu0 0.0
    %432 = vmatpush1.msra.mxu0 0.0
    %433 = vmatprep.subr.mxu0 0.0
    %434 = vmatpush1.msra.mxu0 0.0
    %435 = vmatprep.subr.mxu0 0.0
    %436 = vmatpush1.msra.mxu0 0.0
    %437 = vmatprep.subr.mxu0 0.0
    %438 = vmatpush1.msra.mxu0 0.0
    %439 = vmatprep.subr.mxu0 0.0
    %440 = vmatpush1.msra.mxu0 0.0
    %441 = vmatprep.subr.mxu0 0.0
    %442 = vmatpush1.msra.mxu0 0.0
    %443 = vmatprep.subr.mxu0 0.0
    %444 = vmatpush1.msra.mxu0 0.0
    %445 = vmatprep.subr.mxu0 0.0
    %446 = vmatpush1.msra.mxu0 0.0
    %447 = vmatprep.subr.mxu0 0.0
    %448 = vmatpush1.msra.mxu0 0.0
    %449 = vmatprep.subr.mxu0 0.0
    %450 = vmatpush1.msra.mxu0 0.0
    %451 = vmatprep.subr.mxu0 0.0
    %452 = vmatpush1.msra.mxu0 0.0
    %453 = vmatprep.subr.mxu0 0.0
    %454 = vmatpush1.msra.mxu0 0.0
    %455 = vmatprep.subr.mxu0 0.0
    %456 = vmatpush1.msra.mxu0 0.0
    %457 = vmatprep.subr.mxu0 0.0
    %458 = vmatpush1.msra.mxu0 0.0
    %459 = vmatprep.subr.mxu0 %v349
    %460 = vmatpush1.msra.mxu0 %v348
    %461 = vmatprep.subr.mxu0 %v338
    %462 = vmatpush1.msra.mxu0 %v337
    %463 = vmatprep.subr.mxu0 0.0
    %464 = vmatpush2.msra.mxu0 0.0
    %465 = vmatprep.subr.mxu0 0.0
    %466 = vmatpush2.msra.mxu0 0.0
    %467 = vmatprep.subr.mxu0 0.0
    %468 = vmatpush2.msra.mxu0 0.0
    %469 = vmatprep.subr.mxu0 0.0
    %470 = vmatpush2.msra.mxu0 0.0
    %471 = vmatprep.subr.mxu0 0.0
    %472 = vmatpush2.msra.mxu0 0.0
    %473 = vmatprep.subr.mxu0 0.0
    %474 = vmatpush2.msra.mxu0 0.0
    %475 = vmatprep.subr.mxu0 0.0
    %476 = vmatpush2.msra.mxu0 0.0
    %477 = vmatprep.subr.mxu0 0.0
    %478 = vmatpush2.msra.mxu0 0.0
    %479 = vmatprep.subr.mxu0 0.0
    %480 = vmatpush2.msra.mxu0 0.0
    %481 = vmatprep.subr.mxu0 0.0
    %482 = vmatpush2.msra.mxu0 0.0
    %483 = vmatprep.subr.mxu0 0.0
    %484 = vmatpush2.msra.mxu0 0.0
    %485 = vmatprep.subr.mxu0 0.0
    %486 = vmatpush2.msra.mxu0 0.0
    %487 = vmatprep.subr.mxu0 0.0
    %488 = vmatpush2.msra.mxu0 0.0
    %489 = vmatprep.subr.mxu0 0.0
    %490 = vmatpush2.msra.mxu0 0.0
    %491 = vmatprep.subr.mxu0 0.0
    %492 = vmatpush2.msra.mxu0 0.0
    %493 = vmatprep.subr.mxu0 0.0
    %494 = vmatpush2.msra.mxu0 0.0
    %495 = vmatprep.mubr.f32.mxu0 0.0
    %496 = vmatmul.mubr.f32.gmra.mxu0 %v358
    %v497 = vpop.f32.mrf.mxu0
    %v498 = vadd.f32 0.0, %v497
    %v499 = vpop.f32.mrf.mxu0
    %v500 = vadd.f32 0.0, %v499
    %501 = vdwg.mxu0
    %502 = vmatprep.subr.mxu0 0.0
    %503 = vmatpush1.msra.mxu0 0.0
    %504 = vmatprep.subr.mxu0 0.0
    %505 = vmatpush1.msra.mxu0 0.0
    %506 = vmatprep.subr.mxu0 0.0
    %507 = vmatpush1.msra.mxu0 0.0
    %508 = vmatprep.subr.mxu0 0.0
    %509 = vmatpush1.msra.mxu0 0.0
    %510 = vmatprep.subr.mxu0 0.0
    %511 = vmatpush1.msra.mxu0 0.0
    %512 = vmatprep.subr.mxu0 0.0
    %513 = vmatpush1.msra.mxu0 0.0
    %514 = vmatprep.subr.mxu0 0.0
    %515 = vmatpush1.msra.mxu0 0.0
    %516 = vmatprep.subr.mxu0 0.0
    %517 = vmatpush1.msra.mxu0 0.0
    %518 = vmatprep.subr.mxu0 0.0
    %519 = vmatpush1.msra.mxu0 0.0
    %520 = vmatprep.subr.mxu0 0.0
    %521 = vmatpush1.msra.mxu0 0.0
    %522 = vmatprep.subr.mxu0 0.0
    %523 = vmatpush1.msra.mxu0 0.0
    %524 = vmatprep.subr.mxu0 0.0
    %525 = vmatpush1.msra.mxu0 0.0
    %526 = vmatprep.subr.mxu0 0.0
    %527 = vmatpush1.msra.mxu0 0.0
    %528 = vmatprep.subr.mxu0 0.0
    %529 = vmatpush1.msra.mxu0 0.0
    %530 = vmatprep.subr.mxu0 %v351
    %531 = vmatpush1.msra.mxu0 %v350
    %532 = vmatprep.subr.mxu0 %v340
    %533 = vmatpush1.msra.mxu0 %v339
    %534 = vmatprep.subr.mxu0 0.0
    %535 = vmatpush2.msra.mxu0 0.0
    %536 = vmatprep.subr.mxu0 0.0
    %537 = vmatpush2.msra.mxu0 0.0
    %538 = vmatprep.subr.mxu0 0.0
    %539 = vmatpush2.msra.mxu0 0.0
    %540 = vmatprep.subr.mxu0 0.0
    %541 = vmatpush2.msra.mxu0 0.0
    %542 = vmatprep.subr.mxu0 0.0
    %543 = vmatpush2.msra.mxu0 0.0
    %544 = vmatprep.subr.mxu0 0.0
    %545 = vmatpush2.msra.mxu0 0.0
    %546 = vmatprep.subr.mxu0 0.0
    %547 = vmatpush2.msra.mxu0 0.0
    %548 = vmatprep.subr.mxu0 0.0
    %549 = vmatpush2.msra.mxu0 0.0
    %550 = vmatprep.subr.mxu0 0.0
    %551 = vmatpush2.msra.mxu0 0.0
    %552 = vmatprep.subr.mxu0 0.0
    %553 = vmatpush2.msra.mxu0 0.0
    %554 = vmatprep.subr.mxu0 0.0
    %555 = vmatpush2.msra.mxu0 0.0
    %556 = vmatprep.subr.mxu0 0.0
    %557 = vmatpush2.msra.mxu0 0.0
    %558 = vmatprep.subr.mxu0 0.0
    %559 = vmatpush2.msra.mxu0 0.0
    %560 = vmatprep.subr.mxu0 0.0
    %561 = vmatpush2.msra.mxu0 0.0
    %562 = vmatprep.subr.mxu0 0.0
    %563 = vmatpush2.msra.mxu0 0.0
    %564 = vmatprep.subr.mxu0 0.0
    %565 = vmatpush2.msra.mxu0 0.0
    %566 = vmatprep.mubr.f32.mxu0 0.0
    %567 = vmatmul.mubr.f32.gmra.mxu0 %v358
    %v568 = vpop.f32.mrf.mxu0
    %v569 = vadd.f32 0.0, %v568
    %v570 = vpop.f32.mrf.mxu0
    %v571 = vadd.f32 0.0, %v570
    %572 = vdwg.mxu0
    %573 = vmatprep.subr.mxu0 0.0
    %574 = vmatpush1.msra.mxu0 0.0
    %575 = vmatprep.subr.mxu0 0.0
    %576 = vmatpush1.msra.mxu0 0.0
    %577 = vmatprep.subr.mxu0 0.0
    %578 = vmatpush1.msra.mxu0 0.0
    %579 = vmatprep.subr.mxu0 0.0
    %580 = vmatpush1.msra.mxu0 0.0
    %581 = vmatprep.subr.mxu0 0.0
    %582 = vmatpush1.msra.mxu0 0.0
    %583 = vmatprep.subr.mxu0 0.0
    %584 = vmatpush1.msra.mxu0 0.0
    %585 = vmatprep.subr.mxu0 0.0
    %586 = vmatpush1.msra.mxu0 0.0
    %587 = vmatprep.subr.mxu0 0.0
    %588 = vmatpush1.msra.mxu0 0.0
    %589 = vmatprep.subr.mxu0 0.0
    %590 = vmatpush1.msra.mxu0 0.0
    %591 = vmatprep.subr.mxu0 0.0
    %592 = vmatpush1.msra.mxu0 0.0
    %593 = vmatprep.subr.mxu0 0.0
    %594 = vmatpush1.msra.mxu0 0.0
    %595 = vmatprep.subr.mxu0 0.0
    %596 = vmatpush1.msra.mxu0 0.0
    %597 = vmatprep.subr.mxu0 0.0
    %598 = vmatpush1.msra.mxu0 0.0
    %599 = vmatprep.subr.mxu0 0.0
    %600 = vmatpush1.msra.mxu0 0.0
    %601 = vmatprep.subr.mxu0 %v353
    %602 = vmatpush1.msra.mxu0 %v352
    %603 = vmatprep.subr.mxu0 %v342
    %604 = vmatpush1.msra.mxu0 %v341
    %605 = vmatprep.subr.mxu0 0.0
    %606 = vmatpush2.msra.mxu0 0.0
    %607 = vmatprep.subr.mxu0 0.0
    %608 = vmatpush2.msra.mxu0 0.0
    %609 = vmatprep.subr.mxu0 0.0
    %610 = vmatpush2.msra.mxu0 0.0
    %611 = vmatprep.subr.mxu0 0.0
    %612 = vmatpush2.msra.mxu0 0.0
    %613 = vmatprep.subr.mxu0 0.0
    %614 = vmatpush2.msra.mxu0 0.0
    %615 = vmatprep.subr.mxu0 0.0
    %616 = vmatpush2.msra.mxu0 0.0
    %617 = vmatprep.subr.mxu0 0.0
    %618 = vmatpush2.msra.mxu0 0.0
    %619 = vmatprep.subr.mxu0 0.0
    %620 = vmatpush2.msra.mxu0 0.0
    %621 = vmatprep.subr.mxu0 0.0
    %622 = vmatpush2.msra.mxu0 0.0
    %623 = vmatprep.subr.mxu0 0.0
    %624 = vmatpush2.msra.mxu0 0.0
    %625 = vmatprep.subr.mxu0 0.0
    %626 = vmatpush2.msra.mxu0 0.0
    %627 = vmatprep.subr.mxu0 0.0
    %628 = vmatpush2.msra.mxu0 0.0
    %629 = vmatprep.subr.mxu0 0.0
    %630 = vmatpush2.msra.mxu0 0.0
    %631 = vmatprep.subr.mxu0 0.0
    %632 = vmatpush2.msra.mxu0 0.0
    %633 = vmatprep.subr.mxu0 0.0
    %634 = vmatpush2.msra.mxu0 0.0
    %635 = vmatprep.subr.mxu0 0.0
    %636 = vmatpush2.msra.mxu0 0.0
    %637 = vmatprep.mubr.f32.mxu0 0.0
    %638 = vmatmul.mubr.f32.gmra.mxu0 %v358
    %v639 = vpop.f32.mrf.mxu0
    %v640 = vadd.f32 0.0, %v639
    %v641 = vpop.f32.mrf.mxu0
    %v642 = vadd.f32 0.0, %v641
    %643 = vdwg.mxu0
    %644 = vmatprep.subr.mxu0 0.0
    %645 = vmatpush1.msra.mxu0 0.0
    %646 = vmatprep.subr.mxu0 0.0
    %647 = vmatpush1.msra.mxu0 0.0
    %648 = vmatprep.subr.mxu0 0.0
    %649 = vmatpush1.msra.mxu0 0.0
    %650 = vmatprep.subr.mxu0 0.0
    %651 = vmatpush1.msra.mxu0 0.0
    %652 = vmatprep.subr.mxu0 0.0
    %653 = vmatpush1.msra.mxu0 0.0
    %654 = vmatprep.subr.mxu0 0.0
    %655 = vmatpush1.msra.mxu0 0.0
    %656 = vmatprep.subr.mxu0 0.0
    %657 = vmatpush1.msra.mxu0 0.0
    %658 = vmatprep.subr.mxu0 0.0
    %659 = vmatpush1.msra.mxu0 0.0
    %660 = vmatprep.subr.mxu0 0.0
    %661 = vmatpush1.msra.mxu0 0.0
    %662 = vmatprep.subr.mxu0 0.0
    %663 = vmatpush1.msra.mxu0 0.0
    %664 = vmatprep.subr.mxu0 0.0
    %665 = vmatpush1.msra.mxu0 0.0
    %666 = vmatprep.subr.mxu0 0.0
    %667 = vmatpush1.msra.mxu0 0.0
    %668 = vmatprep.subr.mxu0 0.0
    %669 = vmatpush1.msra.mxu0 0.0
    %670 = vmatprep.subr.mxu0 0.0
    %671 = vmatpush1.msra.mxu0 0.0
    %672 = vmatprep.subr.mxu0 %v355
    %673 = vmatpush1.msra.mxu0 %v354
    %674 = vmatprep.subr.mxu0 %v344
    %675 = vmatpush1.msra.mxu0 %v343
    %676 = vmatprep.subr.mxu0 0.0
    %677 = vmatpush2.msra.mxu0 0.0
    %678 = vmatprep.subr.mxu0 0.0
    %679 = vmatpush2.msra.mxu0 0.0
    %680 = vmatprep.subr.mxu0 0.0
    %681 = vmatpush2.msra.mxu0 0.0
    %682 = vmatprep.subr.mxu0 0.0
    %683 = vmatpush2.msra.mxu0 0.0
    %684 = vmatprep.subr.mxu0 0.0
    %685 = vmatpush2.msra.mxu0 0.0
    %686 = vmatprep.subr.mxu0 0.0
    %687 = vmatpush2.msra.mxu0 0.0
    %688 = vmatprep.subr.mxu0 0.0
    %689 = vmatpush2.msra.mxu0 0.0
    %690 = vmatprep.subr.mxu0 0.0
    %691 = vmatpush2.msra.mxu0 0.0
    %692 = vmatprep.subr.mxu0 0.0
    %693 = vmatpush2.msra.mxu0 0.0
    %694 = vmatprep.subr.mxu0 0.0
    %695 = vmatpush2.msra.mxu0 0.0
    %696 = vmatprep.subr.mxu0 0.0
    %697 = vmatpush2.msra.mxu0 0.0
    %698 = vmatprep.subr.mxu0 0.0
    %699 = vmatpush2.msra.mxu0 0.0
    %700 = vmatprep.subr.mxu0 0.0
    %701 = vmatpush2.msra.mxu0 0.0
    %702 = vmatprep.subr.mxu0 0.0
    %703 = vmatpush2.msra.mxu0 0.0
    %704 = vmatprep.subr.mxu0 0.0
    %705 = vmatpush2.msra.mxu0 0.0
    %706 = vmatprep.subr.mxu0 0.0
    %707 = vmatpush2.msra.mxu0 0.0
    %708 = vmatprep.mubr.f32.mxu0 0.0
    %709 = vmatmul.mubr.f32.gmra.mxu0 %v358
    %v710 = vpop.f32.mrf.mxu0
    %v711 = vadd.f32 0.0, %v710
    %v712 = vpop.f32.mrf.mxu0
    %v713 = vadd.f32 0.0, %v712
    %714 = vdwg.mxu0
    %715 = vmatprep.subr.mxu0 0.0
    %716 = vmatpush1.msra.mxu0 0.0
    %717 = vmatprep.subr.mxu0 0.0
    %718 = vmatpush1.msra.mxu0 0.0
    %719 = vmatprep.subr.mxu0 0.0
    %720 = vmatpush1.msra.mxu0 0.0
    %721 = vmatprep.subr.mxu0 0.0
    %722 = vmatpush1.msra.mxu0 0.0
    %723 = vmatprep.subr.mxu0 0.0
    %724 = vmatpush1.msra.mxu0 0.0
    %725 = vmatprep.subr.mxu0 0.0
    %726 = vmatpush1.msra.mxu0 0.0
    %727 = vmatprep.subr.mxu0 0.0
    %728 = vmatpush1.msra.mxu0 0.0
    %729 = vmatprep.subr.mxu0 0.0
    %730 = vmatpush1.msra.mxu0 0.0
    %731 = vmatprep.subr.mxu0 0.0
    %732 = vmatpush1.msra.mxu0 0.0
    %733 = vmatprep.subr.mxu0 0.0
    %734 = vmatpush1.msra.mxu0 0.0
    %735 = vmatprep.subr.mxu0 0.0
    %736 = vmatpush1.msra.mxu0 0.0
    %737 = vmatprep.subr.mxu0 0.0
    %738 = vmatpush1.msra.mxu0 0.0
    %739 = vmatprep.subr.mxu0 0.0
    %740 = vmatpush1.msra.mxu0 0.0
    %741 = vmatprep.subr.mxu0 0.0
    %742 = vmatpush1.msra.mxu0 0.0
    %743 = vmatprep.subr.mxu0 0.0
    %744 = vmatpush1.msra.mxu0 %v356
    %745 = vmatprep.subr.mxu0 0.0
    %746 = vmatpush1.msra.mxu0 %v345
    %747 = vmatprep.subr.mxu0 0.0
    %748 = vmatpush2.msra.mxu0 0.0
    %749 = vmatprep.subr.mxu0 0.0
    %750 = vmatpush2.msra.mxu0 0.0
    %751 = vmatprep.subr.mxu0 0.0
    %752 = vmatpush2.msra.mxu0 0.0
    %753 = vmatprep.subr.mxu0 0.0
    %754 = vmatpush2.msra.mxu0 0.0
    %755 = vmatprep.subr.mxu0 0.0
    %756 = vmatpush2.msra.mxu0 0.0
    %757 = vmatprep.subr.mxu0 0.0
    %758 = vmatpush2.msra.mxu0 0.0
    %759 = vmatprep.subr.mxu0 0.0
    %760 = vmatpush2.msra.mxu0 0.0
    %761 = vmatprep.subr.mxu0 0.0
    %762 = vmatpush2.msra.mxu0 0.0
    %763 = vmatprep.subr.mxu0 0.0
    %764 = vmatpush2.msra.mxu0 0.0
    %765 = vmatprep.subr.mxu0 0.0
    %766 = vmatpush2.msra.mxu0 0.0
    %767 = vmatprep.subr.mxu0 0.0
    %768 = vmatpush2.msra.mxu0 0.0
    %769 = vmatprep.subr.mxu0 0.0
    %770 = vmatpush2.msra.mxu0 0.0
    %771 = vmatprep.subr.mxu0 0.0
    %772 = vmatpush2.msra.mxu0 0.0
    %773 = vmatprep.subr.mxu0 0.0
    %774 = vmatpush2.msra.mxu0 0.0
    %775 = vmatprep.subr.mxu0 0.0
    %776 = vmatpush2.msra.mxu0 0.0
    %777 = vmatprep.subr.mxu0 0.0
    %778 = vmatpush2.msra.mxu0 0.0
    %779 = vmatprep.mubr.f32.mxu0 0.0
    %780 = vmatmul.mubr.f32.gmra.mxu0 %v358
    %v781 = vpop.f32.mrf.mxu0
    %v782 = vadd.f32 0.0, %v781
    %v783 = vpop.f32.mrf.mxu0
    %784 = vdwg.mxu0
    %v786 = vsel %vm243, %v333, 0
    %788 = vmatprep.subr.mxu0 0.0
    %789 = vmatpush1.msra.mxu0 0.0
    %790 = vmatprep.subr.mxu0 0.0
    %791 = vmatpush1.msra.mxu0 0.0
    %792 = vmatprep.subr.mxu0 0.0
    %793 = vmatpush1.msra.mxu0 0.0
    %794 = vmatprep.subr.mxu0 0.0
    %795 = vmatpush1.msra.mxu0 0.0
    %796 = vmatprep.subr.mxu0 0.0
    %797 = vmatpush1.msra.mxu0 0.0
    %798 = vmatprep.subr.mxu0 0.0
    %799 = vmatpush1.msra.mxu0 0.0
    %800 = vmatprep.subr.mxu0 0.0
    %801 = vmatpush1.msra.mxu0 0.0
    %802 = vmatprep.subr.mxu0 0.0
    %803 = vmatpush1.msra.mxu0 0.0
    %804 = vmatprep.subr.mxu0 0.0
    %805 = vmatpush1.msra.mxu0 0.0
    %806 = vmatprep.subr.mxu0 0.0
    %807 = vmatpush1.msra.mxu0 0.0
    %808 = vmatprep.subr.mxu0 0.0
    %809 = vmatpush1.msra.mxu0 0.0
    %810 = vmatprep.subr.mxu0 0.0
    %811 = vmatpush1.msra.mxu0 0.0
    %812 = vmatprep.subr.mxu0 0.0
    %813 = vmatpush1.msra.mxu0 0.0
    %814 = vmatprep.subr.mxu0 0.0
    %815 = vmatpush1.msra.mxu0 0.0
    %816 = vmatprep.subr.mxu0 %v347
    %817 = vmatpush1.msra.mxu0 %v346
    %818 = vmatprep.subr.mxu0 %v336
    %819 = vmatpush1.msra.mxu0 %v335
    %820 = vmatprep.subr.mxu0 0.0
    %821 = vmatpush2.msra.mxu0 0.0
    %822 = vmatprep.subr.mxu0 0.0
    %823 = vmatpush2.msra.mxu0 0.0
    %824 = vmatprep.subr.mxu0 0.0
    %825 = vmatpush2.msra.mxu0 0.0
    %826 = vmatprep.subr.mxu0 0.0
    %827 = vmatpush2.msra.mxu0 0.0
    %828 = vmatprep.subr.mxu0 0.0
    %829 = vmatpush2.msra.mxu0 0.0
    %830 = vmatprep.subr.mxu0 0.0
    %831 = vmatpush2.msra.mxu0 0.0
    %832 = vmatprep.subr.mxu0 0.0
    %833 = vmatpush2.msra.mxu0 0.0
    %834 = vmatprep.subr.mxu0 0.0
    %835 = vmatpush2.msra.mxu0 0.0
    %836 = vmatprep.subr.mxu0 0.0
    %837 = vmatpush2.msra.mxu0 0.0
    %838 = vmatprep.subr.mxu0 0.0
    %839 = vmatpush2.msra.mxu0 0.0
    %840 = vmatprep.subr.mxu0 0.0
    %841 = vmatpush2.msra.mxu0 0.0
    %842 = vmatprep.subr.mxu0 0.0
    %843 = vmatpush2.msra.mxu0 0.0
    %844 = vmatprep.subr.mxu0 0.0
    %845 = vmatpush2.msra.mxu0 0.0
    %846 = vmatprep.subr.mxu0 0.0
    %847 = vmatpush2.msra.mxu0 0.0
    %848 = vmatprep.subr.mxu0 0.0
    %849 = vmatpush2.msra.mxu0 0.0
    %850 = vmatprep.subr.mxu0 0.0
    %851 = vmatpush2.msra.mxu0 0.0
    %852 = vmatprep.mubr.f32.mxu0 0.0
    %853 = vmatmul.mubr.f32.gmra.mxu0 %v786
    %v854 = vpop.f32.mrf.mxu0
    %v855 = vadd.f32 %v427, %v854
    %v856 = vpop.f32.mrf.mxu0
    %v857 = vadd.f32 %v429, %v856
    %858 = vdwg.mxu0
    %859 = vmatprep.subr.mxu0 0.0
    %860 = vmatpush1.msra.mxu0 0.0
    %861 = vmatprep.subr.mxu0 0.0
    %862 = vmatpush1.msra.mxu0 0.0
    %863 = vmatprep.subr.mxu0 0.0
    %864 = vmatpush1.msra.mxu0 0.0
    %865 = vmatprep.subr.mxu0 0.0
    %866 = vmatpush1.msra.mxu0 0.0
    %867 = vmatprep.subr.mxu0 0.0
    %868 = vmatpush1.msra.mxu0 0.0
    %869 = vmatprep.subr.mxu0 0.0
    %870 = vmatpush1.msra.mxu0 0.0
    %871 = vmatprep.subr.mxu0 0.0
    %872 = vmatpush1.msra.mxu0 0.0
    %873 = vmatprep.subr.mxu0 0.0
    %874 = vmatpush1.msra.mxu0 0.0
    %875 = vmatprep.subr.mxu0 0.0
    %876 = vmatpush1.msra.mxu0 0.0
    %877 = vmatprep.subr.mxu0 0.0
    %878 = vmatpush1.msra.mxu0 0.0
    %879 = vmatprep.subr.mxu0 0.0
    %880 = vmatpush1.msra.mxu0 0.0
    %881 = vmatprep.subr.mxu0 0.0
    %882 = vmatpush1.msra.mxu0 0.0
    %883 = vmatprep.subr.mxu0 0.0
    %884 = vmatpush1.msra.mxu0 0.0
    %885 = vmatprep.subr.mxu0 0.0
    %886 = vmatpush1.msra.mxu0 0.0
    %887 = vmatprep.subr.mxu0 %v349
    %888 = vmatpush1.msra.mxu0 %v348
    %889 = vmatprep.subr.mxu0 %v338
    %890 = vmatpush1.msra.mxu0 %v337
    %891 = vmatprep.subr.mxu0 0.0
    %892 = vmatpush2.msra.mxu0 0.0
    %893 = vmatprep.subr.mxu0 0.0
    %894 = vmatpush2.msra.mxu0 0.0
    %895 = vmatprep.subr.mxu0 0.0
    %896 = vmatpush2.msra.mxu0 0.0
    %897 = vmatprep.subr.mxu0 0.0
    %898 = vmatpush2.msra.mxu0 0.0
    %899 = vmatprep.subr.mxu0 0.0
    %900 = vmatpush2.msra.mxu0 0.0
    %901 = vmatprep.subr.mxu0 0.0
    %902 = vmatpush2.msra.mxu0 0.0
    %903 = vmatprep.subr.mxu0 0.0
    %904 = vmatpush2.msra.mxu0 0.0
    %905 = vmatprep.subr.mxu0 0.0
    %906 = vmatpush2.msra.mxu0 0.0
    %907 = vmatprep.subr.mxu0 0.0
    %908 = vmatpush2.msra.mxu0 0.0
    %909 = vmatprep.subr.mxu0 0.0
    %910 = vmatpush2.msra.mxu0 0.0
    %911 = vmatprep.subr.mxu0 0.0
    %912 = vmatpush2.msra.mxu0 0.0
    %913 = vmatprep.subr.mxu0 0.0
    %914 = vmatpush2.msra.mxu0 0.0
    %915 = vmatprep.subr.mxu0 0.0
    %916 = vmatpush2.msra.mxu0 0.0
    %917 = vmatprep.subr.mxu0 0.0
    %918 = vmatpush2.msra.mxu0 0.0
    %919 = vmatprep.subr.mxu0 0.0
    %920 = vmatpush2.msra.mxu0 0.0
    %921 = vmatprep.subr.mxu0 0.0
    %922 = vmatpush2.msra.mxu0 0.0
    %923 = vmatprep.mubr.f32.mxu0 0.0
    %924 = vmatmul.mubr.f32.gmra.mxu0 %v786
    %v925 = vpop.f32.mrf.mxu0
    %v926 = vadd.f32 %v498, %v925
    %v927 = vpop.f32.mrf.mxu0
    %v928 = vadd.f32 %v500, %v927
    %929 = vdwg.mxu0
    %930 = vmatprep.subr.mxu0 0.0
    %931 = vmatpush1.msra.mxu0 0.0
    %932 = vmatprep.subr.mxu0 0.0
    %933 = vmatpush1.msra.mxu0 0.0
    %934 = vmatprep.subr.mxu0 0.0
    %935 = vmatpush1.msra.mxu0 0.0
    %936 = vmatprep.subr.mxu0 0.0
    %937 = vmatpush1.msra.mxu0 0.0
    %938 = vmatprep.subr.mxu0 0.0
    %939 = vmatpush1.msra.mxu0 0.0
    %940 = vmatprep.subr.mxu0 0.0
    %941 = vmatpush1.msra.mxu0 0.0
    %942 = vmatprep.subr.mxu0 0.0
    %943 = vmatpush1.msra.mxu0 0.0
    %944 = vmatprep.subr.mxu0 0.0
    %945 = vmatpush1.msra.mxu0 0.0
    %946 = vmatprep.subr.mxu0 0.0
    %947 = vmatpush1.msra.mxu0 0.0
    %948 = vmatprep.subr.mxu0 0.0
    %949 = vmatpush1.msra.mxu0 0.0
    %950 = vmatprep.subr.mxu0 0.0
    %951 = vmatpush1.msra.mxu0 0.0
    %952 = vmatprep.subr.mxu0 0.0
    %953 = vmatpush1.msra.mxu0 0.0
    %954 = vmatprep.subr.mxu0 0.0
    %955 = vmatpush1.msra.mxu0 0.0
    %956 = vmatprep.subr.mxu0 0.0
    %957 = vmatpush1.msra.mxu0 0.0
    %958 = vmatprep.subr.mxu0 %v351
    %959 = vmatpush1.msra.mxu0 %v350
    %960 = vmatprep.subr.mxu0 %v340
    %961 = vmatpush1.msra.mxu0 %v339
    %962 = vmatprep.subr.mxu0 0.0
    %963 = vmatpush2.msra.mxu0 0.0
    %964 = vmatprep.subr.mxu0 0.0
    %965 = vmatpush2.msra.mxu0 0.0
    %966 = vmatprep.subr.mxu0 0.0
    %967 = vmatpush2.msra.mxu0 0.0
    %968 = vmatprep.subr.mxu0 0.0
    %969 = vmatpush2.msra.mxu0 0.0
    %970 = vmatprep.subr.mxu0 0.0
    %971 = vmatpush2.msra.mxu0 0.0
    %972 = vmatprep.subr.mxu0 0.0
    %973 = vmatpush2.msra.mxu0 0.0
    %974 = vmatprep.subr.mxu0 0.0
    %975 = vmatpush2.msra.mxu0 0.0
    %976 = vmatprep.subr.mxu0 0.0
    %977 = vmatpush2.msra.mxu0 0.0
    %978 = vmatprep.subr.mxu0 0.0
    %979 = vmatpush2.msra.mxu0 0.0
    %980 = vmatprep.subr.mxu0 0.0
    %981 = vmatpush2.msra.mxu0 0.0
    %982 = vmatprep.subr.mxu0 0.0
    %983 = vmatpush2.msra.mxu0 0.0
    %984 = vmatprep.subr.mxu0 0.0
    %985 = vmatpush2.msra.mxu0 0.0
    %986 = vmatprep.subr.mxu0 0.0
    %987 = vmatpush2.msra.mxu0 0.0
    %988 = vmatprep.subr.mxu0 0.0
    %989 = vmatpush2.msra.mxu0 0.0
    %990 = vmatprep.subr.mxu0 0.0
    %991 = vmatpush2.msra.mxu0 0.0
    %992 = vmatprep.subr.mxu0 0.0
    %993 = vmatpush2.msra.mxu0 0.0
    %994 = vmatprep.mubr.f32.mxu0 0.0
    %995 = vmatmul.mubr.f32.gmra.mxu0 %v786
    %v996 = vpop.f32.mrf.mxu0
    %v997 = vadd.f32 %v569, %v996
    %v998 = vpop.f32.mrf.mxu0
    %v999 = vadd.f32 %v571, %v998
    %1000 = vdwg.mxu0
    %1001 = vmatprep.subr.mxu0 0.0
    %1002 = vmatpush1.msra.mxu0 0.0
    %1003 = vmatprep.subr.mxu0 0.0
    %1004 = vmatpush1.msra.mxu0 0.0
    %1005 = vmatprep.subr.mxu0 0.0
    %1006 = vmatpush1.msra.mxu0 0.0
    %1007 = vmatprep.subr.mxu0 0.0
    %1008 = vmatpush1.msra.mxu0 0.0
    %1009 = vmatprep.subr.mxu0 0.0
    %1010 = vmatpush1.msra.mxu0 0.0
    %1011 = vmatprep.subr.mxu0 0.0
    %1012 = vmatpush1.msra.mxu0 0.0
    %1013 = vmatprep.subr.mxu0 0.0
    %1014 = vmatpush1.msra.mxu0 0.0
    %1015 = vmatprep.subr.mxu0 0.0
    %1016 = vmatpush1.msra.mxu0 0.0
    %1017 = vmatprep.subr.mxu0 0.0
    %1018 = vmatpush1.msra.mxu0 0.0
    %1019 = vmatprep.subr.mxu0 0.0
    %1020 = vmatpush1.msra.mxu0 0.0
    %1021 = vmatprep.subr.mxu0 0.0
    %1022 = vmatpush1.msra.mxu0 0.0
    %1023 = vmatprep.subr.mxu0 0.0
    %1024 = vmatpush1.msra.mxu0 0.0
    %1025 = vmatprep.subr.mxu0 0.0
    %1026 = vmatpush1.msra.mxu0 0.0
    %1027 = vmatprep.subr.mxu0 0.0
    %1028 = vmatpush1.msra.mxu0 0.0
    %1029 = vmatprep.subr.mxu0 %v353
    %1030 = vmatpush1.msra.mxu0 %v352
    %1031 = vmatprep.subr.mxu0 %v342
    %1032 = vmatpush1.msra.mxu0 %v341
    %1033 = vmatprep.subr.mxu0 0.0
    %1034 = vmatpush2.msra.mxu0 0.0
    %1035 = vmatprep.subr.mxu0 0.0
    %1036 = vmatpush2.msra.mxu0 0.0
    %1037 = vmatprep.subr.mxu0 0.0
    %1038 = vmatpush2.msra.mxu0 0.0
    %1039 = vmatprep.subr.mxu0 0.0
    %1040 = vmatpush2.msra.mxu0 0.0
    %1041 = vmatprep.subr.mxu0 0.0
    %1042 = vmatpush2.msra.mxu0 0.0
    %1043 = vmatprep.subr.mxu0 0.0
    %1044 = vmatpush2.msra.mxu0 0.0
    %1045 = vmatprep.subr.mxu0 0.0
    %1046 = vmatpush2.msra.mxu0 0.0
    %1047 = vmatprep.subr.mxu0 0.0
    %1048 = vmatpush2.msra.mxu0 0.0
    %1049 = vmatprep.subr.mxu0 0.0
    %1050 = vmatpush2.msra.mxu0 0.0
    %1051 = vmatprep.subr.mxu0 0.0
    %1052 = vmatpush2.msra.mxu0 0.0
    %1053 = vmatprep.subr.mxu0 0.0
    %1054 = vmatpush2.msra.mxu0 0.0
    %1055 = vmatprep.subr.mxu0 0.0
    %1056 = vmatpush2.msra.mxu0 0.0
    %1057 = vmatprep.subr.mxu0 0.0
    %1058 = vmatpush2.msra.mxu0 0.0
    %1059 = vmatprep.subr.mxu0 0.0
    %1060 = vmatpush2.msra.mxu0 0.0
    %1061 = vmatprep.subr.mxu0 0.0
    %1062 = vmatpush2.msra.mxu0 0.0
    %1063 = vmatprep.subr.mxu0 0.0
    %1064 = vmatpush2.msra.mxu0 0.0
    %1065 = vmatprep.mubr.f32.mxu0 0.0
    %1066 = vmatmul.mubr.f32.gmra.mxu0 %v786
    %v1067 = vpop.f32.mrf.mxu0
    %v1068 = vadd.f32 %v640, %v1067
    %v1069 = vpop.f32.mrf.mxu0
    %v1070 = vadd.f32 %v642, %v1069
    %1071 = vdwg.mxu0
    %1072 = vmatprep.subr.mxu0 0.0
    %1073 = vmatpush1.msra.mxu0 0.0
    %1074 = vmatprep.subr.mxu0 0.0
    %1075 = vmatpush1.msra.mxu0 0.0
    %1076 = vmatprep.subr.mxu0 0.0
    %1077 = vmatpush1.msra.mxu0 0.0
    %1078 = vmatprep.subr.mxu0 0.0
    %1079 = vmatpush1.msra.mxu0 0.0
    %1080 = vmatprep.subr.mxu0 0.0
    %1081 = vmatpush1.msra.mxu0 0.0
    %1082 = vmatprep.subr.mxu0 0.0
    %1083 = vmatpush1.msra.mxu0 0.0
    %1084 = vmatprep.subr.mxu0 0.0
    %1085 = vmatpush1.msra.mxu0 0.0
    %1086 = vmatprep.subr.mxu0 0.0
    %1087 = vmatpush1.msra.mxu0 0.0
    %1088 = vmatprep.subr.mxu0 0.0
    %1089 = vmatpush1.msra.mxu0 0.0
    %1090 = vmatprep.subr.mxu0 0.0
    %1091 = vmatpush1.msra.mxu0 0.0
    %1092 = vmatprep.subr.mxu0 0.0
    %1093 = vmatpush1.msra.mxu0 0.0
    %1094 = vmatprep.subr.mxu0 0.0
    %1095 = vmatpush1.msra.mxu0 0.0
    %1096 = vmatprep.subr.mxu0 0.0
    %1097 = vmatpush1.msra.mxu0 0.0
    %1098 = vmatprep.subr.mxu0 0.0
    %1099 = vmatpush1.msra.mxu0 0.0
    %1100 = vmatprep.subr.mxu0 %v355
    %1101 = vmatpush1.msra.mxu0 %v354
    %1102 = vmatprep.subr.mxu0 %v344
    %1103 = vmatpush1.msra.mxu0 %v343
    %1104 = vmatprep.subr.mxu0 0.0
    %1105 = vmatpush2.msra.mxu0 0.0
    %1106 = vmatprep.subr.mxu0 0.0
    %1107 = vmatpush2.msra.mxu0 0.0
    %1108 = vmatprep.subr.mxu0 0.0
    %1109 = vmatpush2.msra.mxu0 0.0
    %1110 = vmatprep.subr.mxu0 0.0
    %1111 = vmatpush2.msra.mxu0 0.0
    %1112 = vmatprep.subr.mxu0 0.0
    %1113 = vmatpush2.msra.mxu0 0.0
    %1114 = vmatprep.subr.mxu0 0.0
    %1115 = vmatpush2.msra.mxu0 0.0
    %1116 = vmatprep.subr.mxu0 0.0
    %1117 = vmatpush2.msra.mxu0 0.0
    %1118 = vmatprep.subr.mxu0 0.0
    %1119 = vmatpush2.msra.mxu0 0.0
    %1120 = vmatprep.subr.mxu0 0.0
    %1121 = vmatpush2.msra.mxu0 0.0
    %1122 = vmatprep.subr.mxu0 0.0
    %1123 = vmatpush2.msra.mxu0 0.0
    %1124 = vmatprep.subr.mxu0 0.0
    %1125 = vmatpush2.msra.mxu0 0.0
    %1126 = vmatprep.subr.mxu0 0.0
    %1127 = vmatpush2.msra.mxu0 0.0
    %1128 = vmatprep.subr.mxu0 0.0
    %1129 = vmatpush2.msra.mxu0 0.0
    %1130 = vmatprep.subr.mxu0 0.0
    %1131 = vmatpush2.msra.mxu0 0.0
    %1132 = vmatprep.subr.mxu0 0.0
    %1133 = vmatpush2.msra.mxu0 0.0
    %1134 = vmatprep.subr.mxu0 0.0
    %1135 = vmatpush2.msra.mxu0 0.0
    %1136 = vmatprep.mubr.f32.mxu0 0.0
    %1137 = vmatmul.mubr.f32.gmra.mxu0 %v786
    %v1138 = vpop.f32.mrf.mxu0
    %v1139 = vadd.f32 %v711, %v1138
    %v1140 = vpop.f32.mrf.mxu0
    %v1141 = vadd.f32 %v713, %v1140
    %1142 = vdwg.mxu0
    %1143 = vmatprep.subr.mxu0 0.0
    %1144 = vmatpush1.msra.mxu0 0.0
    %1145 = vmatprep.subr.mxu0 0.0
    %1146 = vmatpush1.msra.mxu0 0.0
    %1147 = vmatprep.subr.mxu0 0.0
    %1148 = vmatpush1.msra.mxu0 0.0
    %1149 = vmatprep.subr.mxu0 0.0
    %1150 = vmatpush1.msra.mxu0 0.0
    %1151 = vmatprep.subr.mxu0 0.0
    %1152 = vmatpush1.msra.mxu0 0.0
    %1153 = vmatprep.subr.mxu0 0.0
    %1154 = vmatpush1.msra.mxu0 0.0
    %1155 = vmatprep.subr.mxu0 0.0
    %1156 = vmatpush1.msra.mxu0 0.0
    %1157 = vmatprep.subr.mxu0 0.0
    %1158 = vmatpush1.msra.mxu0 0.0
    %1159 = vmatprep.subr.mxu0 0.0
    %1160 = vmatpush1.msra.mxu0 0.0
    %1161 = vmatprep.subr.mxu0 0.0
    %1162 = vmatpush1.msra.mxu0 0.0
    %1163 = vmatprep.subr.mxu0 0.0
    %1164 = vmatpush1.msra.mxu0 0.0
    %1165 = vmatprep.subr.mxu0 0.0
    %1166 = vmatpush1.msra.mxu0 0.0
    %1167 = vmatprep.subr.mxu0 0.0
    %1168 = vmatpush1.msra.mxu0 0.0
    %1169 = vmatprep.subr.mxu0 0.0
    %1170 = vmatpush1.msra.mxu0 0.0
    %1171 = vmatprep.subr.mxu0 0.0
    %1172 = vmatpush1.msra.mxu0 %v356
    %1173 = vmatprep.subr.mxu0 0.0
    %1174 = vmatpush1.msra.mxu0 %v345
    %1175 = vmatprep.subr.mxu0 0.0
    %1176 = vmatpush2.msra.mxu0 0.0
    %1177 = vmatprep.subr.mxu0 0.0
    %1178 = vmatpush2.msra.mxu0 0.0
    %1179 = vmatprep.subr.mxu0 0.0
    %1180 = vmatpush2.msra.mxu0 0.0
    %1181 = vmatprep.subr.mxu0 0.0
    %1182 = vmatpush2.msra.mxu0 0.0
    %1183 = vmatprep.subr.mxu0 0.0
    %1184 = vmatpush2.msra.mxu0 0.0
    %1185 = vmatprep.subr.mxu0 0.0
    %1186 = vmatpush2.msra.mxu0 0.0
    %1187 = vmatprep.subr.mxu0 0.0
    %1188 = vmatpush2.msra.mxu0 0.0
    %1189 = vmatprep.subr.mxu0 0.0
    %1190 = vmatpush2.msra.mxu0 0.0
    %1191 = vmatprep.subr.mxu0 0.0
    %1192 = vmatpush2.msra.mxu0 0.0
    %1193 = vmatprep.subr.mxu0 0.0
    %1194 = vmatpush2.msra.mxu0 0.0
    %1195 = vmatprep.subr.mxu0 0.0
    %1196 = vmatpush2.msra.mxu0 0.0
    %1197 = vmatprep.subr.mxu0 0.0
    %1198 = vmatpush2.msra.mxu0 0.0
    %1199 = vmatprep.subr.mxu0 0.0
    %1200 = vmatpush2.msra.mxu0 0.0
    %1201 = vmatprep.subr.mxu0 0.0
    %1202 = vmatpush2.msra.mxu0 0.0
    %1203 = vmatprep.subr.mxu0 0.0
    %1204 = vmatpush2.msra.mxu0 0.0
    %1205 = vmatprep.subr.mxu0 0.0
    %1206 = vmatpush2.msra.mxu0 0.0
    %1207 = vmatprep.mubr.f32.mxu0 0.0
    %1208 = vmatmul.mubr.f32.gmra.mxu0 %v786
    %v1209 = vpop.f32.mrf.mxu0
    %v1210 = vadd.f32 %v782, %v1209
    %v1211 = vpop.f32.mrf.mxu0
    %1212 = vdwg.mxu0
    %v1213 = vmin.f32 %v855, %v997
    %v1214 = vmin.f32 %v857, %v999
    %v1215 = vmin.f32 %v926, %v1068
    %v1216 = vmin.f32 %v928, %v1070
    %v1217 = vmin.f32 %v1213, %v1139
    %v1218 = vmin.f32 %v1214, %v1141
    %v1219 = vmin.f32 %v1215, %v1210
    %v1220 = vmin.f32 %v1217, %v1218
    %v1221 = vmin.f32 %v1219, %v1216
    %v1222 = vmin.f32 %v1220, %v1221
    %1223 = vmin.xlane.f32.xlu0 %v1222
    %v1224 = vpop.xlane.xlu0 %1223
    %v1225 = vsub.f32 %v1224, %v855
    %v1226 = vsub.f32 %v1224, %v857
    %v1227 = vsub.f32 %v1224, %v926
    %v1228 = vsub.f32 %v1224, %v928
    %v1229 = vsub.f32 %v1224, %v997
    %v1230 = vsub.f32 %v1224, %v999
    %v1231 = vsub.f32 %v1224, %v1068
    %v1232 = vsub.f32 %v1224, %v1070
    %v1233 = vsub.f32 %v1224, %v1139
    %v1234 = vsub.f32 %v1224, %v1141
    %v1235 = vsub.f32 %v1224, %v1210
    %v1236 = vmul.f32 %v1225, 1.442695
    %v1237 = vpow.pop %v1236
    %v1238 = vmul.f32 %v1226, 1.442695
    %v1239 = vpow.pop %v1238
    %v1240 = vmul.f32 %v1227, 1.442695
    %v1241 = vpow.pop %v1240
    %v1242 = vmul.f32 %v1228, 1.442695
    %v1243 = vpow.pop %v1242
    %v1244 = vmul.f32 %v1229, 1.442695
    %v1245 = vpow.pop %v1244
    %v1246 = vmul.f32 %v1230, 1.442695
    %v1247 = vpow.pop %v1246
    %v1248 = vmul.f32 %v1231, 1.442695
    %v1249 = vpow.pop %v1248
    %v1250 = vmul.f32 %v1232, 1.442695
    %v1251 = vpow.pop %v1250
    %v1252 = vmul.f32 %v1233, 1.442695
    %v1253 = vpow.pop %v1252
    %v1254 = vmul.f32 %v1234, 1.442695
    %v1255 = vpow.pop %v1254
    %v1256 = vmul.f32 %v1235, 1.442695
    %v1257 = vpow.pop %v1256
    %v1258 = vadd.f32 %v1237, %v1239
    %v1259 = vadd.f32 %v1258, %v1241
    %v1260 = vadd.f32 %v1259, %v1243
    %v1261 = vadd.f32 %v1260, %v1245
    %v1262 = vadd.f32 %v1261, %v1247
    %v1263 = vadd.f32 %v1262, %v1249
    %v1264 = vadd.f32 %v1263, %v1251
    %v1265 = vadd.f32 %v1264, %v1253
    %v1266 = vadd.f32 %v1265, %v1255
    %v1267 = vadd.f32 %v1266, %v1257
    %1268 = vadd.xlane.f32.xlu0 %v1267
    %v1269 = vpop.xlane.xlu0 %1268
    %v1270 = vadd.f32 %v1269, 1e-10
    %v1271 = vrcp.pop %v1270
    %v1272 = vmul.f32 1.0, %v1271
    %v1273 = vmul.f32 %v1237, %v1272
    %v1274 = vmul.f32 %v1239, %v1272
    %v1275 = vmul.f32 %v1241, %v1272
    %v1276 = vmul.f32 %v1243, %v1272
    %v1277 = vmul.f32 %v1245, %v1272
    %v1278 = vmul.f32 %v1247, %v1272
    %v1279 = vmul.f32 %v1249, %v1272
    %v1280 = vmul.f32 %v1251, %v1272
    %v1281 = vmul.f32 %v1253, %v1272
    %v1282 = vmul.f32 %v1255, %v1272
    %v1283 = vmul.f32 %v1257, %v1272
    %1284 = vst [vmem:[#allocation6] sm:$0xff] %v1273
    %1285 = vst [vmem:[#allocation6 + $0x8] sm:$0xff] %v1274
    %1286 = vst [vmem:[#allocation6 + $0x10] sm:$0xff] %v1275
    %1287 = vst [vmem:[#allocation6 + $0x18] sm:$0xff] %v1276
    %1288 = vst [vmem:[#allocation6 + $0x20] sm:$0xff] %v1277
    %1289 = vst [vmem:[#allocation6 + $0x28] sm:$0xff] %v1278
    %1290 = vst [vmem:[#allocation6 + $0x30] sm:$0xff] %v1279
    %1291 = vst [vmem:[#allocation6 + $0x38] sm:$0xff] %v1280
    %1292 = vst [vmem:[#allocation6 + $0x40] sm:$0xff] %v1281
    %1293 = vst [vmem:[#allocation6 + $0x48] sm:$0xff] %v1282
    %1294 = vst [vmem:[#allocation6 + $0x50] sm:$0xff] %v1283
    // Predicated region
    $region26: #{tpu_custom_call.1} parent=1 // pred_check
      _
    $region27: #{tpu_custom_call.1} parent=1 // pred_check_branch
      %1296 = sbr.rel (0) target = $region29
    $region28: #{tpu_custom_call.1} parent=1 // pred_region
      %s1298 = ssub.s32 1408, 1408
      %1299 = vsyncadd [#allocation5], %s1298
      %s1301 = sshll.u32 [#allocation6], 4
      %s1302 = int_to_ptr.vmem [resolvable:$true] %s1301
      %1304 = dma.vmem_to_hbm [thread:$0]  %s1302, 1408, %s5, [#allocation5]
    $region29: #{tpu_custom_call.1} parent=1 // pred_fallthru
      _
    // Predicated region
    $region30: #{tpu_custom_call.1} parent=1 // pred_check
      _
    $region31: #{tpu_custom_call.1} parent=1 // pred_check_branch
      %1306 = sbr.rel (0) target = $region33
    $region32: #{tpu_custom_call.1} parent=1 // pred_region
      %1307 = dma.done [#allocation5], 1408
    $region33: #{tpu_custom_call.1} parent=1 // pred_fallthru
      _
    %1308 = vsyncpa [#allocation4], 1
    %1309 = vsyncpa [#allocation5], 1

</llo_original>
